<compile_context>
chip_gen: v6e
topology: v6e:2x2x1
jax: 0.10.0
libtpu: 0.0.40
codegen_flags: <defaults>
</compile_context>

<pallas_src>
import functools

import jax
import jax.numpy as jnp
import numpy as np
from jax.experimental import pallas as pl
from jax.experimental.pallas import tpu as pltpu


def _vmem_capacity_bytes():
    """Per-core VMEM capacity; conservative fallback if the query fails."""
    try:
        return int(pltpu.get_tpu_info().vmem_capacity_bytes)
    except Exception:
        return 64 << 20  # v7x per-TC VMEM (smallest across v5e/v6e/v7x)


def _pick_channel_tile(C, H, W, itemsize, max_tile=None, budget=16 << 20):
    """Largest divisor of C whose (TC, H, W) input block fits the budget."""
    cap = max(1, budget // max(1, H * W * itemsize))
    if max_tile is not None:
        cap = min(cap, int(max_tile))
    cap = max(1, min(cap, C))
    for t in range(cap, 0, -1):
        if C % t == 0:
            return t
    return 1


def _make_sa_kernel(C, TC, H, W, KS, P):
    inv_c = 1.0 / float(C)

    def kernel(x_ref, w_ref, o_ref, sum_ref, max_ref):
        # x_ref: (TC, H, W) native dtype; w_ref: (2*KS*KS,) f32 in SMEM
        # o_ref: (H, W) f32; sum_ref/max_ref: (Hp, Wp) f32 scratch
        c_step = pl.program_id(1)
        n_c = pl.num_programs(1)

        @pl.when(c_step == 0)
        def _init():
            # Zero borders emulate zero-padding of the [avg, max] conv input.
            # Only the interior of the max accumulator starts at -inf, so the
            # border can never go to -inf/NaN through the conv.
            sum_ref[...] = jnp.zeros_like(sum_ref)
            max_ref[...] = jnp.zeros_like(max_ref)
            max_ref[P:P + H, P:P + W] = jnp.full((H, W), -jnp.inf, jnp.float32)

        # Fused single-pass channel reduction: one load of each channel plane
        # feeds both the running sum and the running max (f32 accumulation).
        def body(c, carry):
            s, m = carry
            xc = x_ref[c].astype(jnp.float32)               # (H, W)
            return s + xc, jnp.maximum(m, xc)

        s0 = sum_ref[P:P + H, P:P + W]
        m0 = max_ref[P:P + H, P:P + W]
        s, m = jax.lax.fori_loop(0, TC, body, (s0, m0))
        sum_ref[P:P + H, P:P + W] = s
        max_ref[P:P + H, P:P + W] = m

        @pl.when(c_step == n_c - 1)
        def _finalize():
            avg = sum_ref[...] * inv_c                      # (Hp, Wp), 0 border
            mx = max_ref[...]                               # (Hp, Wp), 0 border
            acc = jnp.zeros((H, W), jnp.float32)
            # 2->1 channel KxK cross-correlation as shifted multiply-adds.
            # dw outer: each lane-offset slice is built once (2*KS total) and
            # reused across all KS sublane (dh) offsets.
            for ci, plane in enumerate((avg, mx)):
                for dw in range(KS):
                    cols = plane[:, dw:dw + W]              # (Hp, W) lane shift
                    for dh in range(KS):
                        wv = w_ref[ci * KS * KS + dh * KS + dw]   # SMEM scalar
                        acc = acc + wv * cols[dh:dh + H, :]       # sublane slice
            o_ref[...] = jax.nn.sigmoid(acc)

    return kernel


@functools.partial(jax.jit, static_argnames=("kernel_size", "max_channel_tile"))
def spatial_attention_forward(x, w, *, kernel_size=7, max_channel_tile=None):
    """x: (B, C, H, W); w: (1, 2, KS, KS) PyTorch Conv2d weight. Returns (B,1,H,W) f32."""
    assert kernel_size in (3, 7), "kernel size must be 3 or 7"
    B, C, H, W = x.shape
    KS = kernel_size
    P = 3 if KS == 7 else 1
    Hp, Wp = H + 2 * P, W + 2 * P

    w_flat = w.reshape(-1).astype(jnp.float32)              # (2*KS*KS,)
    itemsize = x.dtype.itemsize

    cap = _vmem_capacity_bytes()
    budget = max(cap // 8, 1 << 20)                         # ~16 MiB v5e/v6e, ~8 MiB v7x
    TC = _pick_channel_tile(C, H, W, itemsize,
                            max_tile=max_channel_tile, budget=budget)

    in_block = TC * H * W * itemsize
    out_block = H * W * 4
    scratch = 2 * Hp * Wp * 4
    needed = 2 * in_block + 2 * out_block + scratch + (8 << 20)
    vmem_limit = int(min(max(needed, 32 << 20), cap - (8 << 20)))

    kernel = _make_sa_kernel(C, TC, H, W, KS, P)

    out = pl.pallas_call(
        kernel,
        out_shape=jax.ShapeDtypeStruct((B, H, W), jnp.float32),
        grid_spec=pltpu.PrefetchScalarGridSpec(
            num_scalar_prefetch=0,
            grid=(B, C // TC),
            in_specs=[
                # Unpadded input, native dtype, batch dim squeezed.
                pl.BlockSpec((None, TC, H, W), lambda b, c: (b, c, 0, 0)),
                # Conv weights as SMEM scalars.
                pl.BlockSpec(memory_space=pltpu.MemorySpace.SMEM),
            ],
            out_specs=pl.BlockSpec((None, H, W), lambda b, c: (b, 0, 0)),
            scratch_shapes=[
                pltpu.VMEM((Hp, Wp), jnp.float32),   # running channel-sum (padded)
                pltpu.VMEM((Hp, Wp), jnp.float32),   # running channel-max (padded)
            ],
        ),
        compiler_params=pltpu.CompilerParams(
            dimension_semantics=("parallel", "arbitrary"),
            vmem_limit_bytes=vmem_limit),
    )(x, w_flat)
    return out.reshape(B, 1, H, W)


def spatial_attention_reference(x, w, kernel_size=7):
    """Pure-JAX reference mirroring the PyTorch forward exactly."""
    P = 3 if kernel_size == 7 else 1
    xf = x.astype(jnp.float32)
    avg = jnp.mean(xf, axis=1, keepdims=True)
    mx = jnp.max(xf, axis=1, keepdims=True)
    s = jnp.concatenate([avg, mx], axis=1)                  # (B, 2, H, W)
    out = jax.lax.conv_general_dilated(
        s, w.astype(jnp.float32), window_strides=(1, 1),
        padding=((P, P), (P, P)),
        dimension_numbers=("NCHW", "OIHW", "NCHW"),
        precision=jax.lax.Precision.HIGHEST)
    return jax.nn.sigmoid(out)


if __name__ == "__main__":
    key = jax.random.PRNGKey(0)
    kx, kw, kx2, kw2 = jax.random.split(key, 4)

    # Config 1: module default kernel_size=7; force two channel-reduction
    # steps (TC=8 of C=16) to exercise the accumulator init/finalize path.
    B, C, H, W, KS = 2, 16, 16, 16, 7
    x = jax.random.normal(kx, (B, C, H, W), dtype=jnp.float32)
    w = 0.2 * jax.random.normal(kw, (1, 2, KS, KS), dtype=jnp.float32)
    out = jax.block_until_ready(
        spatial_attention_forward(x, w, kernel_size=KS, max_channel_tile=8))
    ref = spatial_attention_reference(x, w, kernel_size=KS)
    np.testing.assert_allclose(np.asarray(out), np.asarray(ref),
                               rtol=1e-4, atol=1e-5)

    # Config 2: kernel_size=3, single channel step (small-shape sanity config).
    B2, C2, H2, W2, KS2 = 2, 4, 16, 16, 3
    x2 = jax.random.normal(kx2, (B2, C2, H2, W2), dtype=jnp.float32)
    w2 = 0.2 * jax.random.normal(kw2, (1, 2, KS2, KS2), dtype=jnp.float32)
    out2 = jax.block_until_ready(
        spatial_attention_forward(x2, w2, kernel_size=KS2))
    ref2 = spatial_attention_reference(x2, w2, kernel_size=KS2)
    np.testing.assert_allclose(np.asarray(out2), np.asarray(ref2),
                               rtol=1e-4, atol=1e-5)

    print("KERNEL_OK")
</pallas_src>

<mosaic_0001>
module attributes {stable_mosaic.version = 11 : i64} {
  func.func @kernel(%arg0: i32, %arg1: i32, %arg2: memref<1x8x16x16xf32, #tpu.memory_space<vmem>>, %arg3: memref<98xf32, #tpu.memory_space<smem>>, %arg4: memref<1x16x16xf32, #tpu.memory_space<vmem>>, %arg5: memref<22x22xf32, #tpu.memory_space<vmem>>, %arg6: memref<22x22xf32, #tpu.memory_space<vmem>>) attributes {dimension_semantics = [#tpu.dimension_semantics<parallel>, #tpu.dimension_semantics<arbitrary>], iteration_bounds = array<i64: 2, 2>, scalar_prefetch = 0 : i64, scratch_operands = 2 : i64, tpu.core_type = #tpu.core_type<tc>, window_params = [{transform_indices = @transform_0, window_bounds = array<i64: 1, 8, 16, 16>}, {transform_indices = @transform_1, window_bounds = array<i64: 98>}, {transform_indices = @transform_2, window_bounds = array<i64: 1, 16, 16>}]} {
    %c0_i32 = arith.constant 0 : i32
    %0 = arith.cmpi eq, %arg1, %c0_i32 : i32
    %1 = arith.extui %0 : i1 to i32
    %c0_i32_0 = arith.constant 0 : i32
    %2 = arith.cmpi ne, %1, %c0_i32_0 : i32
    scf.if %2 {
      %cst = arith.constant 0.000000e+00 : f32
      %12 = vector.broadcast %cst : f32 to vector<22x22xf32>
      %c0 = arith.constant 0 : index
      %c0_12 = arith.constant 0 : index
      %13 = vector.load %arg5[%c0, %c0_12] : memref<22x22xf32, #tpu.memory_space<vmem>>, vector<22x22xf32>
      tpu.vector_store %arg5[%c0, %c0_12], %12 {strides = array<i32>} : memref<22x22xf32, #tpu.memory_space<vmem>>, vector<22x22xf32>,
      %cst_13 = arith.constant 0.000000e+00 : f32
      %14 = vector.broadcast %cst_13 : f32 to vector<22x22xf32>
      %c0_14 = arith.constant 0 : index
      %c0_15 = arith.constant 0 : index
      %15 = vector.load %arg6[%c0_14, %c0_15] : memref<22x22xf32, #tpu.memory_space<vmem>>, vector<22x22xf32>
      tpu.vector_store %arg6[%c0_14, %c0_15], %14 {strides = array<i32>} : memref<22x22xf32, #tpu.memory_space<vmem>>, vector<22x22xf32>,
      %cst_16 = arith.constant 0xFF800000 : f32
      %16 = vector.broadcast %cst_16 : f32 to vector<16x16xf32>
      %c3_17 = arith.constant 3 : index
      %c3_18 = arith.constant 3 : index
      %17 = vector.load %arg6[%c3_17, %c3_18] : memref<22x22xf32, #tpu.memory_space<vmem>>, vector<16x16xf32>
      tpu.vector_store %arg6[%c3_17, %c3_18], %16 {strides = array<i32>} : memref<22x22xf32, #tpu.memory_space<vmem>>, vector<16x16xf32>,
    } else {
    }
    %c3 = arith.constant 3 : index
    %c3_1 = arith.constant 3 : index
    %3 = vector.load %arg5[%c3, %c3_1] : memref<22x22xf32, #tpu.memory_space<vmem>>, vector<16x16xf32>
    %c3_2 = arith.constant 3 : index
    %c3_3 = arith.constant 3 : index
    %4 = vector.load %arg6[%c3_2, %c3_3] : memref<22x22xf32, #tpu.memory_space<vmem>>, vector<16x16xf32>
    %c0_i32_4 = arith.constant 0 : i32
    %c8_i32 = arith.constant 8 : i32
    %5 = arith.addi %c0_i32_4, %c8_i32 : i32
    %c1_i32 = arith.constant 1 : i32
    %6:2 = scf.for %arg7 = %c0_i32_4 to %5 step %c1_i32 iter_args(%arg8 = %3, %arg9 = %4) -> (vector<16x16xf32>, vector<16x16xf32>)  : i32 {
      %c0 = arith.constant 0 : index
      %12 = arith.index_cast %arg7 : i32 to index
      %c0_12 = arith.constant 0 : index
      %c0_13 = arith.constant 0 : index
      %13 = vector.load %arg2[%c0, %12, %c0_12, %c0_13] : memref<1x8x16x16xf32, #tpu.memory_space<vmem>>, vector<1x1x16x16xf32>
      %14 = vector.shape_cast %13 : vector<1x1x16x16xf32> to vector<16x16xf32>
      %15 = arith.addf %arg8, %14 : vector<16x16xf32>
      %16 = arith.maximumf %arg9, %14 : vector<16x16xf32>
      scf.yield %15, %16 : vector<16x16xf32>, vector<16x16xf32>
    }
    %c8_i32_5 = arith.constant 8 : i32
    %c3_6 = arith.constant 3 : index
    %c3_7 = arith.constant 3 : index
    %7 = vector.load %arg5[%c3_6, %c3_7] : memref<22x22xf32, #tpu.memory_space<vmem>>, vector<16x16xf32>
    tpu.vector_store %arg5[%c3_6, %c3_7], %6#0 {strides = array<i32>} : memref<22x22xf32, #tpu.memory_space<vmem>>, vector<16x16xf32>,
    %c3_8 = arith.constant 3 : index
    %c3_9 = arith.constant 3 : index
    %8 = vector.load %arg6[%c3_8, %c3_9] : memref<22x22xf32, #tpu.memory_space<vmem>>, vector<16x16xf32>
    tpu.vector_store %arg6[%c3_8, %c3_9], %6#1 {strides = array<i32>} : memref<22x22xf32, #tpu.memory_space<vmem>>, vector<16x16xf32>,
    %c1_i32_10 = arith.constant 1 : i32
    %9 = arith.cmpi eq, %arg1, %c1_i32_10 : i32
    %10 = arith.extui %9 : i1 to i32
    %c0_i32_11 = arith.constant 0 : i32
    %11 = arith.cmpi ne, %10, %c0_i32_11 : i32
    scf.if %11 {
      %c0 = arith.constant 0 : index
      %c0_12 = arith.constant 0 : index
      %12 = vector.load %arg5[%c0, %c0_12] : memref<22x22xf32, #tpu.memory_space<vmem>>, vector<22x22xf32>
      %cst = arith.constant 6.250000e-02 : f32
      %13 = vector.broadcast %cst : f32 to vector<22x22xf32>
      %14 = arith.mulf %12, %13 : vector<22x22xf32>
      %c0_13 = arith.constant 0 : index
      %c0_14 = arith.constant 0 : index
      %15 = vector.load %arg6[%c0_13, %c0_14] : memref<22x22xf32, #tpu.memory_space<vmem>>, vector<22x22xf32>
      %cst_15 = arith.constant 0.000000e+00 : f32
      %16 = vector.broadcast %cst_15 : f32 to vector<16x16xf32>
      %17 = vector.extract_strided_slice %14 {offsets = [0, 0], sizes = [22, 16], strides = [1, 1]} : vector<22x22xf32> to vector<22x16xf32>
      %c0_16 = arith.constant 0 : index
      %18 = memref.load %arg3[%c0_16] : memref<98xf32, #tpu.memory_space<smem>>
      %19 = vector.extract_strided_slice %17 {offsets = [0, 0], sizes = [16, 16], strides = [1, 1]} : vector<22x16xf32> to vector<16x16xf32>
      %20 = vector.broadcast %18 : f32 to vector<16x16xf32>
      %21 = arith.mulf %20, %19 : vector<16x16xf32>
      %22 = arith.addf %16, %21 : vector<16x16xf32>
      %c7 = arith.constant 7 : index
      %23 = memref.load %arg3[%c7] : memref<98xf32, #tpu.memory_space<smem>>
      %24 = vector.extract_strided_slice %17 {offsets = [1, 0], sizes = [16, 16], strides = [1, 1]} : vector<22x16xf32> to vector<16x16xf32>
      %25 = vector.broadcast %23 : f32 to vector<16x16xf32>
      %26 = arith.mulf %25, %24 : vector<16x16xf32>
      %27 = arith.addf %22, %26 : vector<16x16xf32>
      %c14 = arith.constant 14 : index
      %28 = memref.load %arg3[%c14] : memref<98xf32, #tpu.memory_space<smem>>
      %29 = vector.extract_strided_slice %17 {offsets = [2, 0], sizes = [16, 16], strides = [1, 1]} : vector<22x16xf32> to vector<16x16xf32>
      %30 = vector.broadcast %28 : f32 to vector<16x16xf32>
      %31 = arith.mulf %30, %29 : vector<16x16xf32>
      %32 = arith.addf %27, %31 : vector<16x16xf32>
      %c21 = arith.constant 21 : index
      %33 = memref.load %arg3[%c21] : memref<98xf32, #tpu.memory_space<smem>>
      %34 = vector.extract_strided_slice %17 {offsets = [3, 0], sizes = [16, 16], strides = [1, 1]} : vector<22x16xf32> to vector<16x16xf32>
      %35 = vector.broadcast %33 : f32 to vector<16x16xf32>
      %36 = arith.mulf %35, %34 : vector<16x16xf32>
      %37 = arith.addf %32, %36 : vector<16x16xf32>
      %c28 = arith.constant 28 : index
      %38 = memref.load %arg3[%c28] : memref<98xf32, #tpu.memory_space<smem>>
      %39 = vector.extract_strided_slice %17 {offsets = [4, 0], sizes = [16, 16], strides = [1, 1]} : vector<22x16xf32> to vector<16x16xf32>
      %40 = vector.broadcast %38 : f32 to vector<16x16xf32>
      %41 = arith.mulf %40, %39 : vector<16x16xf32>
      %42 = arith.addf %37, %41 : vector<16x16xf32>
      %c35 = arith.constant 35 : index
      %43 = memref.load %arg3[%c35] : memref<98xf32, #tpu.memory_space<smem>>
      %44 = vector.extract_strided_slice %17 {offsets = [5, 0], sizes = [16, 16], strides = [1, 1]} : vector<22x16xf32> to vector<16x16xf32>
      %45 = vector.broadcast %43 : f32 to vector<16x16xf32>
      %46 = arith.mulf %45, %44 : vector<16x16xf32>
      %47 = arith.addf %42, %46 : vector<16x16xf32>
      %c42 = arith.constant 42 : index
      %48 = memref.load %arg3[%c42] : memref<98xf32, #tpu.memory_space<smem>>
      %49 = vector.extract_strided_slice %17 {offsets = [6, 0], sizes = [16, 16], strides = [1, 1]} : vector<22x16xf32> to vector<16x16xf32>
      %50 = vector.broadcast %48 : f32 to vector<16x16xf32>
      %51 = arith.mulf %50, %49 : vector<16x16xf32>
      %52 = arith.addf %47, %51 : vector<16x16xf32>
      %53 = vector.extract_strided_slice %14 {offsets = [0, 1], sizes = [22, 16], strides = [1, 1]} : vector<22x22xf32> to vector<22x16xf32>
      %c1 = arith.constant 1 : index
      %54 = memref.load %arg3[%c1] : memref<98xf32, #tpu.memory_space<smem>>
      %55 = vector.extract_strided_slice %53 {offsets = [0, 0], sizes = [16, 16], strides = [1, 1]} : vector<22x16xf32> to vector<16x16xf32>
      %56 = vector.broadcast %54 : f32 to vector<16x16xf32>
      %57 = arith.mulf %56, %55 : vector<16x16xf32>
      %58 = arith.addf %52, %57 : vector<16x16xf32>
      %c8 = arith.constant 8 : index
      %59 = memref.load %arg3[%c8] : memref<98xf32, #tpu.memory_space<smem>>
      %60 = vector.extract_strided_slice %53 {offsets = [1, 0], sizes = [16, 16], strides = [1, 1]} : vector<22x16xf32> to vector<16x16xf32>
      %61 = vector.broadcast %59 : f32 to vector<16x16xf32>
      %62 = arith.mulf %61, %60 : vector<16x16xf32>
      %63 = arith.addf %58, %62 : vector<16x16xf32>
      %c15 = arith.constant 15 : index
      %64 = memref.load %arg3[%c15] : memref<98xf32, #tpu.memory_space<smem>>
      %65 = vector.extract_strided_slice %53 {offsets = [2, 0], sizes = [16, 16], strides = [1, 1]} : vector<22x16xf32> to vector<16x16xf32>
      %66 = vector.broadcast %64 : f32 to vector<16x16xf32>
      %67 = arith.mulf %66, %65 : vector<16x16xf32>
      %68 = arith.addf %63, %67 : vector<16x16xf32>
      %c22 = arith.constant 22 : index
      %69 = memref.load %arg3[%c22] : memref<98xf32, #tpu.memory_space<smem>>
      %70 = vector.extract_strided_slice %53 {offsets = [3, 0], sizes = [16, 16], strides = [1, 1]} : vector<22x16xf32> to vector<16x16xf32>
      %71 = vector.broadcast %69 : f32 to vector<16x16xf32>
      %72 = arith.mulf %71, %70 : vector<16x16xf32>
      %73 = arith.addf %68, %72 : vector<16x16xf32>
      %c29 = arith.constant 29 : index
      %74 = memref.load %arg3[%c29] : memref<98xf32, #tpu.memory_space<smem>>
      %75 = vector.extract_strided_slice %53 {offsets = [4, 0], sizes = [16, 16], strides = [1, 1]} : vector<22x16xf32> to vector<16x16xf32>
      %76 = vector.broadcast %74 : f32 to vector<16x16xf32>
      %77 = arith.mulf %76, %75 : vector<16x16xf32>
      %78 = arith.addf %73, %77 : vector<16x16xf32>
      %c36 = arith.constant 36 : index
      %79 = memref.load %arg3[%c36] : memref<98xf32, #tpu.memory_space<smem>>
      %80 = vector.extract_strided_slice %53 {offsets = [5, 0], sizes = [16, 16], strides = [1, 1]} : vector<22x16xf32> to vector<16x16xf32>
      %81 = vector.broadcast %79 : f32 to vector<16x16xf32>
      %82 = arith.mulf %81, %80 : vector<16x16xf32>
      %83 = arith.addf %78, %82 : vector<16x16xf32>
      %c43 = arith.constant 43 : index
      %84 = memref.load %arg3[%c43] : memref<98xf32, #tpu.memory_space<smem>>
      %85 = vector.extract_strided_slice %53 {offsets = [6, 0], sizes = [16, 16], strides = [1, 1]} : vector<22x16xf32> to vector<16x16xf32>
      %86 = vector.broadcast %84 : f32 to vector<16x16xf32>
      %87 = arith.mulf %86, %85 : vector<16x16xf32>
      %88 = arith.addf %83, %87 : vector<16x16xf32>
      %89 = vector.extract_strided_slice %14 {offsets = [0, 2], sizes = [22, 16], strides = [1, 1]} : vector<22x22xf32> to vector<22x16xf32>
      %c2 = arith.constant 2 : index
      %90 = memref.load %arg3[%c2] : memref<98xf32, #tpu.memory_space<smem>>
      %91 = vector.extract_strided_slice %89 {offsets = [0, 0], sizes = [16, 16], strides = [1, 1]} : vector<22x16xf32> to vector<16x16xf32>
      %92 = vector.broadcast %90 : f32 to vector<16x16xf32>
      %93 = arith.mulf %92, %91 : vector<16x16xf32>
      %94 = arith.addf %88, %93 : vector<16x16xf32>
      %c9 = arith.constant 9 : index
      %95 = memref.load %arg3[%c9] : memref<98xf32, #tpu.memory_space<smem>>
      %96 = vector.extract_strided_slice %89 {offsets = [1, 0], sizes = [16, 16], strides = [1, 1]} : vector<22x16xf32> to vector<16x16xf32>
      %97 = vector.broadcast %95 : f32 to vector<16x16xf32>
      %98 = arith.mulf %97, %96 : vector<16x16xf32>
      %99 = arith.addf %94, %98 : vector<16x16xf32>
      %c16 = arith.constant 16 : index
      %100 = memref.load %arg3[%c16] : memref<98xf32, #tpu.memory_space<smem>>
      %101 = vector.extract_strided_slice %89 {offsets = [2, 0], sizes = [16, 16], strides = [1, 1]} : vector<22x16xf32> to vector<16x16xf32>
      %102 = vector.broadcast %100 : f32 to vector<16x16xf32>
      %103 = arith.mulf %102, %101 : vector<16x16xf32>
      %104 = arith.addf %99, %103 : vector<16x16xf32>
      %c23 = arith.constant 23 : index
      %105 = memref.load %arg3[%c23] : memref<98xf32, #tpu.memory_space<smem>>
      %106 = vector.extract_strided_slice %89 {offsets = [3, 0], sizes = [16, 16], strides = [1, 1]} : vector<22x16xf32> to vector<16x16xf32>
      %107 = vector.broadcast %105 : f32 to vector<16x16xf32>
      %108 = arith.mulf %107, %106 : vector<16x16xf32>
      %109 = arith.addf %104, %108 : vector<16x16xf32>
      %c30 = arith.constant 30 : index
      %110 = memref.load %arg3[%c30] : memref<98xf32, #tpu.memory_space<smem>>
      %111 = vector.extract_strided_slice %89 {offsets = [4, 0], sizes = [16, 16], strides = [1, 1]} : vector<22x16xf32> to vector<16x16xf32>
      %112 = vector.broadcast %110 : f32 to vector<16x16xf32>
      %113 = arith.mulf %112, %111 : vector<16x16xf32>
      %114 = arith.addf %109, %113 : vector<16x16xf32>
      %c37 = arith.constant 37 : index
      %115 = memref.load %arg3[%c37] : memref<98xf32, #tpu.memory_space<smem>>
      %116 = vector.extract_strided_slice %89 {offsets = [5, 0], sizes = [16, 16], strides = [1, 1]} : vector<22x16xf32> to vector<16x16xf32>
      %117 = vector.broadcast %115 : f32 to vector<16x16xf32>
      %118 = arith.mulf %117, %116 : vector<16x16xf32>
      %119 = arith.addf %114, %118 : vector<16x16xf32>
      %c44 = arith.constant 44 : index
      %120 = memref.load %arg3[%c44] : memref<98xf32, #tpu.memory_space<smem>>
      %121 = vector.extract_strided_slice %89 {offsets = [6, 0], sizes = [16, 16], strides = [1, 1]} : vector<22x16xf32> to vector<16x16xf32>
      %122 = vector.broadcast %120 : f32 to vector<16x16xf32>
      %123 = arith.mulf %122, %121 : vector<16x16xf32>
      %124 = arith.addf %119, %123 : vector<16x16xf32>
      %125 = vector.extract_strided_slice %14 {offsets = [0, 3], sizes = [22, 16], strides = [1, 1]} : vector<22x22xf32> to vector<22x16xf32>
      %c3_17 = arith.constant 3 : index
      %126 = memref.load %arg3[%c3_17] : memref<98xf32, #tpu.memory_space<smem>>
      %127 = vector.extract_strided_slice %125 {offsets = [0, 0], sizes = [16, 16], strides = [1, 1]} : vector<22x16xf32> to vector<16x16xf32>
      %128 = vector.broadcast %126 : f32 to vector<16x16xf32>
      %129 = arith.mulf %128, %127 : vector<16x16xf32>
      %130 = arith.addf %124, %129 : vector<16x16xf32>
      %c10 = arith.constant 10 : index
      %131 = memref.load %arg3[%c10] : memref<98xf32, #tpu.memory_space<smem>>
      %132 = vector.extract_strided_slice %125 {offsets = [1, 0], sizes = [16, 16], strides = [1, 1]} : vector<22x16xf32> to vector<16x16xf32>
      %133 = vector.broadcast %131 : f32 to vector<16x16xf32>
      %134 = arith.mulf %133, %132 : vector<16x16xf32>
      %135 = arith.addf %130, %134 : vector<16x16xf32>
      %c17 = arith.constant 17 : index
      %136 = memref.load %arg3[%c17] : memref<98xf32, #tpu.memory_space<smem>>
      %137 = vector.extract_strided_slice %125 {offsets = [2, 0], sizes = [16, 16], strides = [1, 1]} : vector<22x16xf32> to vector<16x16xf32>
      %138 = vector.broadcast %136 : f32 to vector<16x16xf32>
      %139 = arith.mulf %138, %137 : vector<16x16xf32>
      %140 = arith.addf %135, %139 : vector<16x16xf32>
      %c24 = arith.constant 24 : index
      %141 = memref.load %arg3[%c24] : memref<98xf32, #tpu.memory_space<smem>>
      %142 = vector.extract_strided_slice %125 {offsets = [3, 0], sizes = [16, 16], strides = [1, 1]} : vector<22x16xf32> to vector<16x16xf32>
      %143 = vector.broadcast %141 : f32 to vector<16x16xf32>
      %144 = arith.mulf %143, %142 : vector<16x16xf32>
      %145 = arith.addf %140, %144 : vector<16x16xf32>
      %c31 = arith.constant 31 : index
      %146 = memref.load %arg3[%c31] : memref<98xf32, #tpu.memory_space<smem>>
      %147 = vector.extract_strided_slice %125 {offsets = [4, 0], sizes = [16, 16], strides = [1, 1]} : vector<22x16xf32> to vector<16x16xf32>
      %148 = vector.broadcast %146 : f32 to vector<16x16xf32>
      %149 = arith.mulf %148, %147 : vector<16x16xf32>
      %150 = arith.addf %145, %149 : vector<16x16xf32>
      %c38 = arith.constant 38 : index
      %151 = memref.load %arg3[%c38] : memref<98xf32, #tpu.memory_space<smem>>
      %152 = vector.extract_strided_slice %125 {offsets = [5, 0], sizes = [16, 16], strides = [1, 1]} : vector<22x16xf32> to vector<16x16xf32>
      %153 = vector.broadcast %151 : f32 to vector<16x16xf32>
      %154 = arith.mulf %153, %152 : vector<16x16xf32>
      %155 = arith.addf %150, %154 : vector<16x16xf32>
      %c45 = arith.constant 45 : index
      %156 = memref.load %arg3[%c45] : memref<98xf32, #tpu.memory_space<smem>>
      %157 = vector.extract_strided_slice %125 {offsets = [6, 0], sizes = [16, 16], strides = [1, 1]} : vector<22x16xf32> to vector<16x16xf32>
      %158 = vector.broadcast %156 : f32 to vector<16x16xf32>
      %159 = arith.mulf %158, %157 : vector<16x16xf32>
      %160 = arith.addf %155, %159 : vector<16x16xf32>
      %161 = vector.extract_strided_slice %14 {offsets = [0, 4], sizes = [22, 16], strides = [1, 1]} : vector<22x22xf32> to vector<22x16xf32>
      %c4 = arith.constant 4 : index
      %162 = memref.load %arg3[%c4] : memref<98xf32, #tpu.memory_space<smem>>
      %163 = vector.extract_strided_slice %161 {offsets = [0, 0], sizes = [16, 16], strides = [1, 1]} : vector<22x16xf32> to vector<16x16xf32>
      %164 = vector.broadcast %162 : f32 to vector<16x16xf32>
      %165 = arith.mulf %164, %163 : vector<16x16xf32>
      %166 = arith.addf %160, %165 : vector<16x16xf32>
      %c11 = arith.constant 11 : index
      %167 = memref.load %arg3[%c11] : memref<98xf32, #tpu.memory_space<smem>>
      %168 = vector.extract_strided_slice %161 {offsets = [1, 0], sizes = [16, 16], strides = [1, 1]} : vector<22x16xf32> to vector<16x16xf32>
      %169 = vector.broadcast %167 : f32 to vector<16x16xf32>
      %170 = arith.mulf %169, %168 : vector<16x16xf32>
      %171 = arith.addf %166, %170 : vector<16x16xf32>
      %c18 = arith.constant 18 : index
      %172 = memref.load %arg3[%c18] : memref<98xf32, #tpu.memory_space<smem>>
      %173 = vector.extract_strided_slice %161 {offsets = [2, 0], sizes = [16, 16], strides = [1, 1]} : vector<22x16xf32> to vector<16x16xf32>
      %174 = vector.broadcast %172 : f32 to vector<16x16xf32>
      %175 = arith.mulf %174, %173 : vector<16x16xf32>
      %176 = arith.addf %171, %175 : vector<16x16xf32>
      %c25 = arith.constant 25 : index
      %177 = memref.load %arg3[%c25] : memref<98xf32, #tpu.memory_space<smem>>
      %178 = vector.extract_strided_slice %161 {offsets = [3, 0], sizes = [16, 16], strides = [1, 1]} : vector<22x16xf32> to vector<16x16xf32>
      %179 = vector.broadcast %177 : f32 to vector<16x16xf32>
      %180 = arith.mulf %179, %178 : vector<16x16xf32>
      %181 = arith.addf %176, %180 : vector<16x16xf32>
      %c32 = arith.constant 32 : index
      %182 = memref.load %arg3[%c32] : memref<98xf32, #tpu.memory_space<smem>>
      %183 = vector.extract_strided_slice %161 {offsets = [4, 0], sizes = [16, 16], strides = [1, 1]} : vector<22x16xf32> to vector<16x16xf32>
      %184 = vector.broadcast %182 : f32 to vector<16x16xf32>
      %185 = arith.mulf %184, %183 : vector<16x16xf32>
      %186 = arith.addf %181, %185 : vector<16x16xf32>
      %c39 = arith.constant 39 : index
      %187 = memref.load %arg3[%c39] : memref<98xf32, #tpu.memory_space<smem>>
      %188 = vector.extract_strided_slice %161 {offsets = [5, 0], sizes = [16, 16], strides = [1, 1]} : vector<22x16xf32> to vector<16x16xf32>
      %189 = vector.broadcast %187 : f32 to vector<16x16xf32>
      %190 = arith.mulf %189, %188 : vector<16x16xf32>
      %191 = arith.addf %186, %190 : vector<16x16xf32>
      %c46 = arith.constant 46 : index
      %192 = memref.load %arg3[%c46] : memref<98xf32, #tpu.memory_space<smem>>
      %193 = vector.extract_strided_slice %161 {offsets = [6, 0], sizes = [16, 16], strides = [1, 1]} : vector<22x16xf32> to vector<16x16xf32>
      %194 = vector.broadcast %192 : f32 to vector<16x16xf32>
      %195 = arith.mulf %194, %193 : vector<16x16xf32>
      %196 = arith.addf %191, %195 : vector<16x16xf32>
      %197 = vector.extract_strided_slice %14 {offsets = [0, 5], sizes = [22, 16], strides = [1, 1]} : vector<22x22xf32> to vector<22x16xf32>
      %c5 = arith.constant 5 : index
      %198 = memref.load %arg3[%c5] : memref<98xf32, #tpu.memory_space<smem>>
      %199 = vector.extract_strided_slice %197 {offsets = [0, 0], sizes = [16, 16], strides = [1, 1]} : vector<22x16xf32> to vector<16x16xf32>
      %200 = vector.broadcast %198 : f32 to vector<16x16xf32>
      %201 = arith.mulf %200, %199 : vector<16x16xf32>
      %202 = arith.addf %196, %201 : vector<16x16xf32>
      %c12 = arith.constant 12 : index
      %203 = memref.load %arg3[%c12] : memref<98xf32, #tpu.memory_space<smem>>
      %204 = vector.extract_strided_slice %197 {offsets = [1, 0], sizes = [16, 16], strides = [1, 1]} : vector<22x16xf32> to vector<16x16xf32>
      %205 = vector.broadcast %203 : f32 to vector<16x16xf32>
      %206 = arith.mulf %205, %204 : vector<16x16xf32>
      %207 = arith.addf %202, %206 : vector<16x16xf32>
      %c19 = arith.constant 19 : index
      %208 = memref.load %arg3[%c19] : memref<98xf32, #tpu.memory_space<smem>>
      %209 = vector.extract_strided_slice %197 {offsets = [2, 0], sizes = [16, 16], strides = [1, 1]} : vector<22x16xf32> to vector<16x16xf32>
      %210 = vector.broadcast %208 : f32 to vector<16x16xf32>
      %211 = arith.mulf %210, %209 : vector<16x16xf32>
      %212 = arith.addf %207, %211 : vector<16x16xf32>
      %c26 = arith.constant 26 : index
      %213 = memref.load %arg3[%c26] : memref<98xf32, #tpu.memory_space<smem>>
      %214 = vector.extract_strided_slice %197 {offsets = [3, 0], sizes = [16, 16], strides = [1, 1]} : vector<22x16xf32> to vector<16x16xf32>
      %215 = vector.broadcast %213 : f32 to vector<16x16xf32>
      %216 = arith.mulf %215, %214 : vector<16x16xf32>
      %217 = arith.addf %212, %216 : vector<16x16xf32>
      %c33 = arith.constant 33 : index
      %218 = memref.load %arg3[%c33] : memref<98xf32, #tpu.memory_space<smem>>
      %219 = vector.extract_strided_slice %197 {offsets = [4, 0], sizes = [16, 16], strides = [1, 1]} : vector<22x16xf32> to vector<16x16xf32>
      %220 = vector.broadcast %218 : f32 to vector<16x16xf32>
      %221 = arith.mulf %220, %219 : vector<16x16xf32>
      %222 = arith.addf %217, %221 : vector<16x16xf32>
      %c40 = arith.constant 40 : index
      %223 = memref.load %arg3[%c40] : memref<98xf32, #tpu.memory_space<smem>>
      %224 = vector.extract_strided_slice %197 {offsets = [5, 0], sizes = [16, 16], strides = [1, 1]} : vector<22x16xf32> to vector<16x16xf32>
      %225 = vector.broadcast %223 : f32 to vector<16x16xf32>
      %226 = arith.mulf %225, %224 : vector<16x16xf32>
      %227 = arith.addf %222, %226 : vector<16x16xf32>
      %c47 = arith.constant 47 : index
      %228 = memref.load %arg3[%c47] : memref<98xf32, #tpu.memory_space<smem>>
      %229 = vector.extract_strided_slice %197 {offsets = [6, 0], sizes = [16, 16], strides = [1, 1]} : vector<22x16xf32> to vector<16x16xf32>
      %230 = vector.broadcast %228 : f32 to vector<16x16xf32>
      %231 = arith.mulf %230, %229 : vector<16x16xf32>
      %232 = arith.addf %227, %231 : vector<16x16xf32>
      %233 = vector.extract_strided_slice %14 {offsets = [0, 6], sizes = [22, 16], strides = [1, 1]} : vector<22x22xf32> to vector<22x16xf32>
      %c6 = arith.constant 6 : index
      %234 = memref.load %arg3[%c6] : memref<98xf32, #tpu.memory_space<smem>>
      %235 = vector.extract_strided_slice %233 {offsets = [0, 0], sizes = [16, 16], strides = [1, 1]} : vector<22x16xf32> to vector<16x16xf32>
      %236 = vector.broadcast %234 : f32 to vector<16x16xf32>
      %237 = arith.mulf %236, %235 : vector<16x16xf32>
      %238 = arith.addf %232, %237 : vector<16x16xf32>
      %c13 = arith.constant 13 : index
      %239 = memref.load %arg3[%c13] : memref<98xf32, #tpu.memory_space<smem>>
      %240 = vector.extract_strided_slice %233 {offsets = [1, 0], sizes = [16, 16], strides = [1, 1]} : vector<22x16xf32> to vector<16x16xf32>
      %241 = vector.broadcast %239 : f32 to vector<16x16xf32>
      %242 = arith.mulf %241, %240 : vector<16x16xf32>
      %243 = arith.addf %238, %242 : vector<16x16xf32>
      %c20 = arith.constant 20 : index
      %244 = memref.load %arg3[%c20] : memref<98xf32, #tpu.memory_space<smem>>
      %245 = vector.extract_strided_slice %233 {offsets = [2, 0], sizes = [16, 16], strides = [1, 1]} : vector<22x16xf32> to vector<16x16xf32>
      %246 = vector.broadcast %244 : f32 to vector<16x16xf32>
      %247 = arith.mulf %246, %245 : vector<16x16xf32>
      %248 = arith.addf %243, %247 : vector<16x16xf32>
      %c27 = arith.constant 27 : index
      %249 = memref.load %arg3[%c27] : memref<98xf32, #tpu.memory_space<smem>>
      %250 = vector.extract_strided_slice %233 {offsets = [3, 0], sizes = [16, 16], strides = [1, 1]} : vector<22x16xf32> to vector<16x16xf32>
      %251 = vector.broadcast %249 : f32 to vector<16x16xf32>
      %252 = arith.mulf %251, %250 : vector<16x16xf32>
      %253 = arith.addf %248, %252 : vector<16x16xf32>
      %c34 = arith.constant 34 : index
      %254 = memref.load %arg3[%c34] : memref<98xf32, #tpu.memory_space<smem>>
      %255 = vector.extract_strided_slice %233 {offsets = [4, 0], sizes = [16, 16], strides = [1, 1]} : vector<22x16xf32> to vector<16x16xf32>
      %256 = vector.broadcast %254 : f32 to vector<16x16xf32>
      %257 = arith.mulf %256, %255 : vector<16x16xf32>
      %258 = arith.addf %253, %257 : vector<16x16xf32>
      %c41 = arith.constant 41 : index
      %259 = memref.load %arg3[%c41] : memref<98xf32, #tpu.memory_space<smem>>
      %260 = vector.extract_strided_slice %233 {offsets = [5, 0], sizes = [16, 16], strides = [1, 1]} : vector<22x16xf32> to vector<16x16xf32>
      %261 = vector.broadcast %259 : f32 to vector<16x16xf32>
      %262 = arith.mulf %261, %260 : vector<16x16xf32>
      %263 = arith.addf %258, %262 : vector<16x16xf32>
      %c48 = arith.constant 48 : index
      %264 = memref.load %arg3[%c48] : memref<98xf32, #tpu.memory_space<smem>>
      %265 = vector.extract_strided_slice %233 {offsets = [6, 0], sizes = [16, 16], strides = [1, 1]} : vector<22x16xf32> to vector<16x16xf32>
      %266 = vector.broadcast %264 : f32 to vector<16x16xf32>
      %267 = arith.mulf %266, %265 : vector<16x16xf32>
      %268 = arith.addf %263, %267 : vector<16x16xf32>
      %269 = vector.extract_strided_slice %15 {offsets = [0, 0], sizes = [22, 16], strides = [1, 1]} : vector<22x22xf32> to vector<22x16xf32>
      %c49 = arith.constant 49 : index
      %270 = memref.load %arg3[%c49] : memref<98xf32, #tpu.memory_space<smem>>
      %271 = vector.extract_strided_slice %269 {offsets = [0, 0], sizes = [16, 16], strides = [1, 1]} : vector<22x16xf32> to vector<16x16xf32>
      %272 = vector.broadcast %270 : f32 to vector<16x16xf32>
      %273 = arith.mulf %272, %271 : vector<16x16xf32>
      %274 = arith.addf %268, %273 : vector<16x16xf32>
      %c56 = arith.constant 56 : index
      %275 = memref.load %arg3[%c56] : memref<98xf32, #tpu.memory_space<smem>>
      %276 = vector.extract_strided_slice %269 {offsets = [1, 0], sizes = [16, 16], strides = [1, 1]} : vector<22x16xf32> to vector<16x16xf32>
      %277 = vector.broadcast %275 : f32 to vector<16x16xf32>
      %278 = arith.mulf %277, %276 : vector<16x16xf32>
      %279 = arith.addf %274, %278 : vector<16x16xf32>
      %c63 = arith.constant 63 : index
      %280 = memref.load %arg3[%c63] : memref<98xf32, #tpu.memory_space<smem>>
      %281 = vector.extract_strided_slice %269 {offsets = [2, 0], sizes = [16, 16], strides = [1, 1]} : vector<22x16xf32> to vector<16x16xf32>
      %282 = vector.broadcast %280 : f32 to vector<16x16xf32>
      %283 = arith.mulf %282, %281 : vector<16x16xf32>
      %284 = arith.addf %279, %283 : vector<16x16xf32>
      %c70 = arith.constant 70 : index
      %285 = memref.load %arg3[%c70] : memref<98xf32, #tpu.memory_space<smem>>
      %286 = vector.extract_strided_slice %269 {offsets = [3, 0], sizes = [16, 16], strides = [1, 1]} : vector<22x16xf32> to vector<16x16xf32>
      %287 = vector.broadcast %285 : f32 to vector<16x16xf32>
      %288 = arith.mulf %287, %286 : vector<16x16xf32>
      %289 = arith.addf %284, %288 : vector<16x16xf32>
      %c77 = arith.constant 77 : index
      %290 = memref.load %arg3[%c77] : memref<98xf32, #tpu.memory_space<smem>>
      %291 = vector.extract_strided_slice %269 {offsets = [4, 0], sizes = [16, 16], strides = [1, 1]} : vector<22x16xf32> to vector<16x16xf32>
      %292 = vector.broadcast %290 : f32 to vector<16x16xf32>
      %293 = arith.mulf %292, %291 : vector<16x16xf32>
      %294 = arith.addf %289, %293 : vector<16x16xf32>
      %c84 = arith.constant 84 : index
      %295 = memref.load %arg3[%c84] : memref<98xf32, #tpu.memory_space<smem>>
      %296 = vector.extract_strided_slice %269 {offsets = [5, 0], sizes = [16, 16], strides = [1, 1]} : vector<22x16xf32> to vector<16x16xf32>
      %297 = vector.broadcast %295 : f32 to vector<16x16xf32>
      %298 = arith.mulf %297, %296 : vector<16x16xf32>
      %299 = arith.addf %294, %298 : vector<16x16xf32>
      %c91 = arith.constant 91 : index
      %300 = memref.load %arg3[%c91] : memref<98xf32, #tpu.memory_space<smem>>
      %301 = vector.extract_strided_slice %269 {offsets = [6, 0], sizes = [16, 16], strides = [1, 1]} : vector<22x16xf32> to vector<16x16xf32>
      %302 = vector.broadcast %300 : f32 to vector<16x16xf32>
      %303 = arith.mulf %302, %301 : vector<16x16xf32>
      %304 = arith.addf %299, %303 : vector<16x16xf32>
      %305 = vector.extract_strided_slice %15 {offsets = [0, 1], sizes = [22, 16], strides = [1, 1]} : vector<22x22xf32> to vector<22x16xf32>
      %c50 = arith.constant 50 : index
      %306 = memref.load %arg3[%c50] : memref<98xf32, #tpu.memory_space<smem>>
      %307 = vector.extract_strided_slice %305 {offsets = [0, 0], sizes = [16, 16], strides = [1, 1]} : vector<22x16xf32> to vector<16x16xf32>
      %308 = vector.broadcast %306 : f32 to vector<16x16xf32>
      %309 = arith.mulf %308, %307 : vector<16x16xf32>
      %310 = arith.addf %304, %309 : vector<16x16xf32>
      %c57 = arith.constant 57 : index
      %311 = memref.load %arg3[%c57] : memref<98xf32, #tpu.memory_space<smem>>
      %312 = vector.extract_strided_slice %305 {offsets = [1, 0], sizes = [16, 16], strides = [1, 1]} : vector<22x16xf32> to vector<16x16xf32>
      %313 = vector.broadcast %311 : f32 to vector<16x16xf32>
      %314 = arith.mulf %313, %312 : vector<16x16xf32>
      %315 = arith.addf %310, %314 : vector<16x16xf32>
      %c64 = arith.constant 64 : index
      %316 = memref.load %arg3[%c64] : memref<98xf32, #tpu.memory_space<smem>>
      %317 = vector.extract_strided_slice %305 {offsets = [2, 0], sizes = [16, 16], strides = [1, 1]} : vector<22x16xf32> to vector<16x16xf32>
      %318 = vector.broadcast %316 : f32 to vector<16x16xf32>
      %319 = arith.mulf %318, %317 : vector<16x16xf32>
      %320 = arith.addf %315, %319 : vector<16x16xf32>
      %c71 = arith.constant 71 : index
      %321 = memref.load %arg3[%c71] : memref<98xf32, #tpu.memory_space<smem>>
      %322 = vector.extract_strided_slice %305 {offsets = [3, 0], sizes = [16, 16], strides = [1, 1]} : vector<22x16xf32> to vector<16x16xf32>
      %323 = vector.broadcast %321 : f32 to vector<16x16xf32>
      %324 = arith.mulf %323, %322 : vector<16x16xf32>
      %325 = arith.addf %320, %324 : vector<16x16xf32>
      %c78 = arith.constant 78 : index
      %326 = memref.load %arg3[%c78] : memref<98xf32, #tpu.memory_space<smem>>
      %327 = vector.extract_strided_slice %305 {offsets = [4, 0], sizes = [16, 16], strides = [1, 1]} : vector<22x16xf32> to vector<16x16xf32>
      %328 = vector.broadcast %326 : f32 to vector<16x16xf32>
      %329 = arith.mulf %328, %327 : vector<16x16xf32>
      %330 = arith.addf %325, %329 : vector<16x16xf32>
      %c85 = arith.constant 85 : index
      %331 = memref.load %arg3[%c85] : memref<98xf32, #tpu.memory_space<smem>>
      %332 = vector.extract_strided_slice %305 {offsets = [5, 0], sizes = [16, 16], strides = [1, 1]} : vector<22x16xf32> to vector<16x16xf32>
      %333 = vector.broadcast %331 : f32 to vector<16x16xf32>
      %334 = arith.mulf %333, %332 : vector<16x16xf32>
      %335 = arith.addf %330, %334 : vector<16x16xf32>
      %c92 = arith.constant 92 : index
      %336 = memref.load %arg3[%c92] : memref<98xf32, #tpu.memory_space<smem>>
      %337 = vector.extract_strided_slice %305 {offsets = [6, 0], sizes = [16, 16], strides = [1, 1]} : vector<22x16xf32> to vector<16x16xf32>
      %338 = vector.broadcast %336 : f32 to vector<16x16xf32>
      %339 = arith.mulf %338, %337 : vector<16x16xf32>
      %340 = arith.addf %335, %339 : vector<16x16xf32>
      %341 = vector.extract_strided_slice %15 {offsets = [0, 2], sizes = [22, 16], strides = [1, 1]} : vector<22x22xf32> to vector<22x16xf32>
      %c51 = arith.constant 51 : index
      %342 = memref.load %arg3[%c51] : memref<98xf32, #tpu.memory_space<smem>>
      %343 = vector.extract_strided_slice %341 {offsets = [0, 0], sizes = [16, 16], strides = [1, 1]} : vector<22x16xf32> to vector<16x16xf32>
      %344 = vector.broadcast %342 : f32 to vector<16x16xf32>
      %345 = arith.mulf %344, %343 : vector<16x16xf32>
      %346 = arith.addf %340, %345 : vector<16x16xf32>
      %c58 = arith.constant 58 : index
      %347 = memref.load %arg3[%c58] : memref<98xf32, #tpu.memory_space<smem>>
      %348 = vector.extract_strided_slice %341 {offsets = [1, 0], sizes = [16, 16], strides = [1, 1]} : vector<22x16xf32> to vector<16x16xf32>
      %349 = vector.broadcast %347 : f32 to vector<16x16xf32>
      %350 = arith.mulf %349, %348 : vector<16x16xf32>
      %351 = arith.addf %346, %350 : vector<16x16xf32>
      %c65 = arith.constant 65 : index
      %352 = memref.load %arg3[%c65] : memref<98xf32, #tpu.memory_space<smem>>
      %353 = vector.extract_strided_slice %341 {offsets = [2, 0], sizes = [16, 16], strides = [1, 1]} : vector<22x16xf32> to vector<16x16xf32>
      %354 = vector.broadcast %352 : f32 to vector<16x16xf32>
      %355 = arith.mulf %354, %353 : vector<16x16xf32>
      %356 = arith.addf %351, %355 : vector<16x16xf32>
      %c72 = arith.constant 72 : index
      %357 = memref.load %arg3[%c72] : memref<98xf32, #tpu.memory_space<smem>>
      %358 = vector.extract_strided_slice %341 {offsets = [3, 0], sizes = [16, 16], strides = [1, 1]} : vector<22x16xf32> to vector<16x16xf32>
      %359 = vector.broadcast %357 : f32 to vector<16x16xf32>
      %360 = arith.mulf %359, %358 : vector<16x16xf32>
      %361 = arith.addf %356, %360 : vector<16x16xf32>
      %c79 = arith.constant 79 : index
      %362 = memref.load %arg3[%c79] : memref<98xf32, #tpu.memory_space<smem>>
      %363 = vector.extract_strided_slice %341 {offsets = [4, 0], sizes = [16, 16], strides = [1, 1]} : vector<22x16xf32> to vector<16x16xf32>
      %364 = vector.broadcast %362 : f32 to vector<16x16xf32>
      %365 = arith.mulf %364, %363 : vector<16x16xf32>
      %366 = arith.addf %361, %365 : vector<16x16xf32>
      %c86 = arith.constant 86 : index
      %367 = memref.load %arg3[%c86] : memref<98xf32, #tpu.memory_space<smem>>
      %368 = vector.extract_strided_slice %341 {offsets = [5, 0], sizes = [16, 16], strides = [1, 1]} : vector<22x16xf32> to vector<16x16xf32>
      %369 = vector.broadcast %367 : f32 to vector<16x16xf32>
      %370 = arith.mulf %369, %368 : vector<16x16xf32>
      %371 = arith.addf %366, %370 : vector<16x16xf32>
      %c93 = arith.constant 93 : index
      %372 = memref.load %arg3[%c93] : memref<98xf32, #tpu.memory_space<smem>>
      %373 = vector.extract_strided_slice %341 {offsets = [6, 0], sizes = [16, 16], strides = [1, 1]} : vector<22x16xf32> to vector<16x16xf32>
      %374 = vector.broadcast %372 : f32 to vector<16x16xf32>
      %375 = arith.mulf %374, %373 : vector<16x16xf32>
      %376 = arith.addf %371, %375 : vector<16x16xf32>
      %377 = vector.extract_strided_slice %15 {offsets = [0, 3], sizes = [22, 16], strides = [1, 1]} : vector<22x22xf32> to vector<22x16xf32>
      %c52 = arith.constant 52 : index
      %378 = memref.load %arg3[%c52] : memref<98xf32, #tpu.memory_space<smem>>
      %379 = vector.extract_strided_slice %377 {offsets = [0, 0], sizes = [16, 16], strides = [1, 1]} : vector<22x16xf32> to vector<16x16xf32>
      %380 = vector.broadcast %378 : f32 to vector<16x16xf32>
      %381 = arith.mulf %380, %379 : vector<16x16xf32>
      %382 = arith.addf %376, %381 : vector<16x16xf32>
      %c59 = arith.constant 59 : index
      %383 = memref.load %arg3[%c59] : memref<98xf32, #tpu.memory_space<smem>>
      %384 = vector.extract_strided_slice %377 {offsets = [1, 0], sizes = [16, 16], strides = [1, 1]} : vector<22x16xf32> to vector<16x16xf32>
      %385 = vector.broadcast %383 : f32 to vector<16x16xf32>
      %386 = arith.mulf %385, %384 : vector<16x16xf32>
      %387 = arith.addf %382, %386 : vector<16x16xf32>
      %c66 = arith.constant 66 : index
      %388 = memref.load %arg3[%c66] : memref<98xf32, #tpu.memory_space<smem>>
      %389 = vector.extract_strided_slice %377 {offsets = [2, 0], sizes = [16, 16], strides = [1, 1]} : vector<22x16xf32> to vector<16x16xf32>
      %390 = vector.broadcast %388 : f32 to vector<16x16xf32>
      %391 = arith.mulf %390, %389 : vector<16x16xf32>
      %392 = arith.addf %387, %391 : vector<16x16xf32>
      %c73 = arith.constant 73 : index
      %393 = memref.load %arg3[%c73] : memref<98xf32, #tpu.memory_space<smem>>
      %394 = vector.extract_strided_slice %377 {offsets = [3, 0], sizes = [16, 16], strides = [1, 1]} : vector<22x16xf32> to vector<16x16xf32>
      %395 = vector.broadcast %393 : f32 to vector<16x16xf32>
      %396 = arith.mulf %395, %394 : vector<16x16xf32>
      %397 = arith.addf %392, %396 : vector<16x16xf32>
      %c80 = arith.constant 80 : index
      %398 = memref.load %arg3[%c80] : memref<98xf32, #tpu.memory_space<smem>>
      %399 = vector.extract_strided_slice %377 {offsets = [4, 0], sizes = [16, 16], strides = [1, 1]} : vector<22x16xf32> to vector<16x16xf32>
      %400 = vector.broadcast %398 : f32 to vector<16x16xf32>
      %401 = arith.mulf %400, %399 : vector<16x16xf32>
      %402 = arith.addf %397, %401 : vector<16x16xf32>
      %c87 = arith.constant 87 : index
      %403 = memref.load %arg3[%c87] : memref<98xf32, #tpu.memory_space<smem>>
      %404 = vector.extract_strided_slice %377 {offsets = [5, 0], sizes = [16, 16], strides = [1, 1]} : vector<22x16xf32> to vector<16x16xf32>
      %405 = vector.broadcast %403 : f32 to vector<16x16xf32>
      %406 = arith.mulf %405, %404 : vector<16x16xf32>
      %407 = arith.addf %402, %406 : vector<16x16xf32>
      %c94 = arith.constant 94 : index
      %408 = memref.load %arg3[%c94] : memref<98xf32, #tpu.memory_space<smem>>
      %409 = vector.extract_strided_slice %377 {offsets = [6, 0], sizes = [16, 16], strides = [1, 1]} : vector<22x16xf32> to vector<16x16xf32>
      %410 = vector.broadcast %408 : f32 to vector<16x16xf32>
      %411 = arith.mulf %410, %409 : vector<16x16xf32>
      %412 = arith.addf %407, %411 : vector<16x16xf32>
      %413 = vector.extract_strided_slice %15 {offsets = [0, 4], sizes = [22, 16], strides = [1, 1]} : vector<22x22xf32> to vector<22x16xf32>
      %c53 = arith.constant 53 : index
      %414 = memref.load %arg3[%c53] : memref<98xf32, #tpu.memory_space<smem>>
      %415 = vector.extract_strided_slice %413 {offsets = [0, 0], sizes = [16, 16], strides = [1, 1]} : vector<22x16xf32> to vector<16x16xf32>
      %416 = vector.broadcast %414 : f32 to vector<16x16xf32>
      %417 = arith.mulf %416, %415 : vector<16x16xf32>
      %418 = arith.addf %412, %417 : vector<16x16xf32>
      %c60 = arith.constant 60 : index
      %419 = memref.load %arg3[%c60] : memref<98xf32, #tpu.memory_space<smem>>
      %420 = vector.extract_strided_slice %413 {offsets = [1, 0], sizes = [16, 16], strides = [1, 1]} : vector<22x16xf32> to vector<16x16xf32>
      %421 = vector.broadcast %419 : f32 to vector<16x16xf32>
      %422 = arith.mulf %421, %420 : vector<16x16xf32>
      %423 = arith.addf %418, %422 : vector<16x16xf32>
      %c67 = arith.constant 67 : index
      %424 = memref.load %arg3[%c67] : memref<98xf32, #tpu.memory_space<smem>>
      %425 = vector.extract_strided_slice %413 {offsets = [2, 0], sizes = [16, 16], strides = [1, 1]} : vector<22x16xf32> to vector<16x16xf32>
      %426 = vector.broadcast %424 : f32 to vector<16x16xf32>
      %427 = arith.mulf %426, %425 : vector<16x16xf32>
      %428 = arith.addf %423, %427 : vector<16x16xf32>
      %c74 = arith.constant 74 : index
      %429 = memref.load %arg3[%c74] : memref<98xf32, #tpu.memory_space<smem>>
      %430 = vector.extract_strided_slice %413 {offsets = [3, 0], sizes = [16, 16], strides = [1, 1]} : vector<22x16xf32> to vector<16x16xf32>
      %431 = vector.broadcast %429 : f32 to vector<16x16xf32>
      %432 = arith.mulf %431, %430 : vector<16x16xf32>
      %433 = arith.addf %428, %432 : vector<16x16xf32>
      %c81 = arith.constant 81 : index
      %434 = memref.load %arg3[%c81] : memref<98xf32, #tpu.memory_space<smem>>
      %435 = vector.extract_strided_slice %413 {offsets = [4, 0], sizes = [16, 16], strides = [1, 1]} : vector<22x16xf32> to vector<16x16xf32>
      %436 = vector.broadcast %434 : f32 to vector<16x16xf32>
      %437 = arith.mulf %436, %435 : vector<16x16xf32>
      %438 = arith.addf %433, %437 : vector<16x16xf32>
      %c88 = arith.constant 88 : index
      %439 = memref.load %arg3[%c88] : memref<98xf32, #tpu.memory_space<smem>>
      %440 = vector.extract_strided_slice %413 {offsets = [5, 0], sizes = [16, 16], strides = [1, 1]} : vector<22x16xf32> to vector<16x16xf32>
      %441 = vector.broadcast %439 : f32 to vector<16x16xf32>
      %442 = arith.mulf %441, %440 : vector<16x16xf32>
      %443 = arith.addf %438, %442 : vector<16x16xf32>
      %c95 = arith.constant 95 : index
      %444 = memref.load %arg3[%c95] : memref<98xf32, #tpu.memory_space<smem>>
      %445 = vector.extract_strided_slice %413 {offsets = [6, 0], sizes = [16, 16], strides = [1, 1]} : vector<22x16xf32> to vector<16x16xf32>
      %446 = vector.broadcast %444 : f32 to vector<16x16xf32>
      %447 = arith.mulf %446, %445 : vector<16x16xf32>
      %448 = arith.addf %443, %447 : vector<16x16xf32>
      %449 = vector.extract_strided_slice %15 {offsets = [0, 5], sizes = [22, 16], strides = [1, 1]} : vector<22x22xf32> to vector<22x16xf32>
      %c54 = arith.constant 54 : index
      %450 = memref.load %arg3[%c54] : memref<98xf32, #tpu.memory_space<smem>>
      %451 = vector.extract_strided_slice %449 {offsets = [0, 0], sizes = [16, 16], strides = [1, 1]} : vector<22x16xf32> to vector<16x16xf32>
      %452 = vector.broadcast %450 : f32 to vector<16x16xf32>
      %453 = arith.mulf %452, %451 : vector<16x16xf32>
      %454 = arith.addf %448, %453 : vector<16x16xf32>
      %c61 = arith.constant 61 : index
      %455 = memref.load %arg3[%c61] : memref<98xf32, #tpu.memory_space<smem>>
      %456 = vector.extract_strided_slice %449 {offsets = [1, 0], sizes = [16, 16], strides = [1, 1]} : vector<22x16xf32> to vector<16x16xf32>
      %457 = vector.broadcast %455 : f32 to vector<16x16xf32>
      %458 = arith.mulf %457, %456 : vector<16x16xf32>
      %459 = arith.addf %454, %458 : vector<16x16xf32>
      %c68 = arith.constant 68 : index
      %460 = memref.load %arg3[%c68] : memref<98xf32, #tpu.memory_space<smem>>
      %461 = vector.extract_strided_slice %449 {offsets = [2, 0], sizes = [16, 16], strides = [1, 1]} : vector<22x16xf32> to vector<16x16xf32>
      %462 = vector.broadcast %460 : f32 to vector<16x16xf32>
      %463 = arith.mulf %462, %461 : vector<16x16xf32>
      %464 = arith.addf %459, %463 : vector<16x16xf32>
      %c75 = arith.constant 75 : index
      %465 = memref.load %arg3[%c75] : memref<98xf32, #tpu.memory_space<smem>>
      %466 = vector.extract_strided_slice %449 {offsets = [3, 0], sizes = [16, 16], strides = [1, 1]} : vector<22x16xf32> to vector<16x16xf32>
      %467 = vector.broadcast %465 : f32 to vector<16x16xf32>
      %468 = arith.mulf %467, %466 : vector<16x16xf32>
      %469 = arith.addf %464, %468 : vector<16x16xf32>
      %c82 = arith.constant 82 : index
      %470 = memref.load %arg3[%c82] : memref<98xf32, #tpu.memory_space<smem>>
      %471 = vector.extract_strided_slice %449 {offsets = [4, 0], sizes = [16, 16], strides = [1, 1]} : vector<22x16xf32> to vector<16x16xf32>
      %472 = vector.broadcast %470 : f32 to vector<16x16xf32>
      %473 = arith.mulf %472, %471 : vector<16x16xf32>
      %474 = arith.addf %469, %473 : vector<16x16xf32>
      %c89 = arith.constant 89 : index
      %475 = memref.load %arg3[%c89] : memref<98xf32, #tpu.memory_space<smem>>
      %476 = vector.extract_strided_slice %449 {offsets = [5, 0], sizes = [16, 16], strides = [1, 1]} : vector<22x16xf32> to vector<16x16xf32>
      %477 = vector.broadcast %475 : f32 to vector<16x16xf32>
      %478 = arith.mulf %477, %476 : vector<16x16xf32>
      %479 = arith.addf %474, %478 : vector<16x16xf32>
      %c96 = arith.constant 96 : index
      %480 = memref.load %arg3[%c96] : memref<98xf32, #tpu.memory_space<smem>>
      %481 = vector.extract_strided_slice %449 {offsets = [6, 0], sizes = [16, 16], strides = [1, 1]} : vector<22x16xf32> to vector<16x16xf32>
      %482 = vector.broadcast %480 : f32 to vector<16x16xf32>
      %483 = arith.mulf %482, %481 : vector<16x16xf32>
      %484 = arith.addf %479, %483 : vector<16x16xf32>
      %485 = vector.extract_strided_slice %15 {offsets = [0, 6], sizes = [22, 16], strides = [1, 1]} : vector<22x22xf32> to vector<22x16xf32>
      %c55 = arith.constant 55 : index
      %486 = memref.load %arg3[%c55] : memref<98xf32, #tpu.memory_space<smem>>
      %487 = vector.extract_strided_slice %485 {offsets = [0, 0], sizes = [16, 16], strides = [1, 1]} : vector<22x16xf32> to vector<16x16xf32>
      %488 = vector.broadcast %486 : f32 to vector<16x16xf32>
      %489 = arith.mulf %488, %487 : vector<16x16xf32>
      %490 = arith.addf %484, %489 : vector<16x16xf32>
      %c62 = arith.constant 62 : index
      %491 = memref.load %arg3[%c62] : memref<98xf32, #tpu.memory_space<smem>>
      %492 = vector.extract_strided_slice %485 {offsets = [1, 0], sizes = [16, 16], strides = [1, 1]} : vector<22x16xf32> to vector<16x16xf32>
      %493 = vector.broadcast %491 : f32 to vector<16x16xf32>
      %494 = arith.mulf %493, %492 : vector<16x16xf32>
      %495 = arith.addf %490, %494 : vector<16x16xf32>
      %c69 = arith.constant 69 : index
      %496 = memref.load %arg3[%c69] : memref<98xf32, #tpu.memory_space<smem>>
      %497 = vector.extract_strided_slice %485 {offsets = [2, 0], sizes = [16, 16], strides = [1, 1]} : vector<22x16xf32> to vector<16x16xf32>
      %498 = vector.broadcast %496 : f32 to vector<16x16xf32>
      %499 = arith.mulf %498, %497 : vector<16x16xf32>
      %500 = arith.addf %495, %499 : vector<16x16xf32>
      %c76 = arith.constant 76 : index
      %501 = memref.load %arg3[%c76] : memref<98xf32, #tpu.memory_space<smem>>
      %502 = vector.extract_strided_slice %485 {offsets = [3, 0], sizes = [16, 16], strides = [1, 1]} : vector<22x16xf32> to vector<16x16xf32>
      %503 = vector.broadcast %501 : f32 to vector<16x16xf32>
      %504 = arith.mulf %503, %502 : vector<16x16xf32>
      %505 = arith.addf %500, %504 : vector<16x16xf32>
      %c83 = arith.constant 83 : index
      %506 = memref.load %arg3[%c83] : memref<98xf32, #tpu.memory_space<smem>>
      %507 = vector.extract_strided_slice %485 {offsets = [4, 0], sizes = [16, 16], strides = [1, 1]} : vector<22x16xf32> to vector<16x16xf32>
      %508 = vector.broadcast %506 : f32 to vector<16x16xf32>
      %509 = arith.mulf %508, %507 : vector<16x16xf32>
      %510 = arith.addf %505, %509 : vector<16x16xf32>
      %c90 = arith.constant 90 : index
      %511 = memref.load %arg3[%c90] : memref<98xf32, #tpu.memory_space<smem>>
      %512 = vector.extract_strided_slice %485 {offsets = [5, 0], sizes = [16, 16], strides = [1, 1]} : vector<22x16xf32> to vector<16x16xf32>
      %513 = vector.broadcast %511 : f32 to vector<16x16xf32>
      %514 = arith.mulf %513, %512 : vector<16x16xf32>
      %515 = arith.addf %510, %514 : vector<16x16xf32>
      %c97 = arith.constant 97 : index
      %516 = memref.load %arg3[%c97] : memref<98xf32, #tpu.memory_space<smem>>
      %517 = vector.extract_strided_slice %485 {offsets = [6, 0], sizes = [16, 16], strides = [1, 1]} : vector<22x16xf32> to vector<16x16xf32>
      %518 = vector.broadcast %516 : f32 to vector<16x16xf32>
      %519 = arith.mulf %518, %517 : vector<16x16xf32>
      %520 = arith.addf %515, %519 : vector<16x16xf32>
      %521 = arith.negf %520 : vector<16x16xf32>
      %522 = math.exp %521 : vector<16x16xf32>
      %cst_18 = arith.constant 1.000000e+00 : f32
      %523 = vector.broadcast %cst_18 : f32 to vector<16x16xf32>
      %524 = arith.addf %523, %522 : vector<16x16xf32>
      %525 = arith.divf %523, %524 : vector<16x16xf32>
      %c0_19 = arith.constant 0 : index
      %c0_20 = arith.constant 0 : index
      %c0_21 = arith.constant 0 : index
      %526 = vector.load %arg4[%c0_19, %c0_20, %c0_21] : memref<1x16x16xf32, #tpu.memory_space<vmem>>, vector<1x16x16xf32>
      %527 = vector.shape_cast %526 : vector<1x16x16xf32> to vector<16x16xf32>
      %528 = vector.shape_cast %525 : vector<16x16xf32> to vector<1x16x16xf32>
      tpu.vector_store %arg4[%c0_19, %c0_20, %c0_21], %528 {strides = array<i32>} : memref<1x16x16xf32, #tpu.memory_space<vmem>>, vector<1x16x16xf32>,
    } else {
    }
    return
  }
  func.func @transform_0(%arg0: i32, %arg1: i32) -> (i32, i32, i32, i32) {
    %c0_i32 = arith.constant 0 : i32
    %c0_i32_0 = arith.constant 0 : i32
    %c0_i32_1 = arith.constant 0 : i32
    return %arg0, %arg1, %c0_i32, %c0_i32_0 : i32, i32, i32, i32
  }
  func.func @transform_1(%arg0: i32, %arg1: i32) -> i32 {
    %c0_i32 = arith.constant 0 : i32
    %c0_i32_0 = arith.constant 0 : i32
    return %c0_i32 : i32
  }
  func.func @transform_2(%arg0: i32, %arg1: i32) -> (i32, i32, i32) {
    %c0_i32 = arith.constant 0 : i32
    %c0_i32_0 = arith.constant 0 : i32
    %c0_i32_1 = arith.constant 0 : i32
    return %arg0, %c0_i32, %c0_i32_0 : i32, i32, i32
  }
}

</mosaic_0001>

<llo_original>
// kernel: spatial_attention_forward.1
$region0: #{spatial_attention_forward.1}
  #allocation0 [shape = 'u32[]', space=smem, size = 0x4, offset = 0x4, fixed_abs, tag = 'smem constant byte address 0x4 - core index']
  #allocation1 [shape = 'u32[144,128]{1,0:T(1,128)}', space=vmem, size = 0x12000, scoped, tag = 'internal scratch']
  #allocation2 [shape = 'f32[22,22]{1,0:T(8,128)}', space=vmem, size = 0x3000, scoped, tag = 'scratch operand']
  #allocation3 [shape = 'f32[22,22]{1,0:T(8,128)}', space=vmem, size = 0x3000, scoped, tag = 'scratch operand']
  %s0 = inlined_call_operand.hbm [shape: f32[2,16,16,16], index: 0, kind: input, shape index: {}]
  %s1 = inlined_call_operand.vmem [shape: f32[98], index: 1, kind: input, shape index: {}]
  %s2 = inlined_call_operand.hbm [shape: f32[2,16,16], index: 2, kind: output, shape index: {}]
  %s3 = sld [smem:[#allocation0]]
  $region64: #{spatial_attention_forward.1} parent=0
    _
  %s5 = ssub.s32 1, %s3
  %s6 = scalar_select 0, %s5, %s3
  $region1: #{spatial_attention_forward.1} parent=0
    #allocation4 [shape = 'u8[131072]{0}', space=vmem, size = 0x20000, scoped, tag = 'input window, operand 0']
    #allocation5 [shape = 's32[2]{0}', space=sflag, size = 0x8, scoped, tag = 'scoped memory for spatial_attention_forward.1']
    #allocation6 [shape = 's32[2]{0}', space=sflag, size = 0x8, scoped, tag = 'scoped memory for spatial_attention_forward.1']
    #allocation7 [shape = 's32[2]{0}', space=sflag, size = 0x8, scoped, tag = 'scoped memory for spatial_attention_forward.1']
    #allocation8 [shape = 'u8[512]{0}', space=smem, size = 0x200, scoped, tag = 'input window, operand 1, single buffered']
    #allocation9 [shape = 'u8[16384]{0}', space=vmem, size = 0x4000, scoped, tag = 'output window, operand 0']
    %7 = vsyncpa [#allocation5], 0
    %s8 = scalar_lea.sflag [#allocation5], 1
    %9 = vsyncpa %s8, 0
    %10 = vsyncpa [#allocation7], 0
    %11 = vsyncpa [#allocation6], 0
    %s12 = scalar_lea.sflag [#allocation6], 1
    %13 = vsyncpa %s12, 0
    loop: start=0, step=1, limit=6
    $region2: #{spatial_attention_forward.1} parent=1 // loop_pre_header
      _
    $region3: #{spatial_attention_forward.1} parent=1 // loop_header
      %s15 = sphi 0, %s19
      %p16 = scmp.ge.s32.totalorder %s15, 6
      %s22 = sphi 0, %s34
      %s23 = sphi 0, %s30
      %s24 = sphi 0, %s22
      %s25 = sphi 0, %s23
      %s26 = sphi 0, %s24
      %s27 = sphi 0, %s25
      %s39 = sphi 0, %s41
      %s42 = sphi 0, %s39
      %s43 = sphi 0, %s42
      %s59 = sphi 0, %s43
      %s63 = sphi 0, %s63
      %s65 = sphi 0, %s63
      %s66 = sphi 0, %s65
      %s80 = sphi 0, %s66
      %s86 = sphi 0, %s88
      %s89 = sphi 0, %s86
      %s90 = sphi 0, %s89
      %s106 = sphi 0, %s90
    $region4: #{spatial_attention_forward.1} parent=1 // loop_header_branch
      %18 = sbr.rel (%p16) target = $region8
    $region5: #{spatial_attention_forward.1} parent=1 // loop_body
      %s20 = ssub.s32 %s15, 1
      %s21 = ssub.s32 %s15, 2
      %s28 = sadd.s32 1, %s23
      %p29 = scmp.ge.s32.totalorder %s28, 2
      %s30 = scalar_select %p29, 0, %s28
      %s31 = sadd.s32 1, %s22
      %s32 = scalar_select %p29, %s31, %s22
      %p33 = scmp.ge.s32.totalorder %s32, 2
      %s34 = scalar_select %p33, 0, %s32
      %s35 = ssub.s32 %s22, %s34
      %s36 = ssub.s32 %s23, %s30
      %s37 = sor.u32 %s35, %s36
      %p38 = scmp.eq.s32.totalorder %s37, 0
      %s40 = sadd.s32 %s39, 1
      %s41 = scalar_select %p38, %s39, %s40
      %p44 = pneg %p38
      %p45 = scmp.eq.s32.totalorder %s15, 3
      %p46 = por %p44, %p45
      %p47 = scmp.ne.s32.totalorder %s39, %s42
      %p48 = scmp.eq.s32.totalorder %s15, 0
      %p49 = por %p47, %p48
      %p50 = scmp.ne.s32.totalorder %s39, %s42
      %p51 = scmp.eq.s32.totalorder %s20, 3
      %p52 = por %p50, %p51
      %p53 = scmp.ne.s32.totalorder %s42, %s43
      %p54 = scmp.eq.s32.totalorder %s20, 0
      %p55 = por %p53, %p54
      %p56 = scmp.ne.s32.totalorder %s42, %s43
      %p57 = scmp.eq.s32.totalorder %s21, 3
      %p58 = por %p56, %p57
      %p60 = scmp.ne.s32.totalorder %s43, %s59
      %p61 = scmp.eq.s32.totalorder %s21, 0
      %p62 = por %p60, %p61
      %s64 = sadd.s32 %s63, 1
      %p67 = scmp.eq.s32.totalorder %s15, 3
      %p68 = scmp.ne.s32.totalorder %s63, %s65
      %p69 = scmp.eq.s32.totalorder %s15, 0
      %p70 = por %p68, %p69
      %p71 = scmp.ne.s32.totalorder %s63, %s65
      %p72 = scmp.eq.s32.totalorder %s20, 3
      %p73 = por %p71, %p72
      %p74 = scmp.ne.s32.totalorder %s65, %s66
      %p75 = scmp.eq.s32.totalorder %s20, 0
      %p76 = por %p74, %p75
      %p77 = scmp.ne.s32.totalorder %s65, %s66
      %p78 = scmp.eq.s32.totalorder %s21, 3
      %p79 = por %p77, %p78
      %p81 = scmp.ne.s32.totalorder %s66, %s80
      %p82 = scmp.eq.s32.totalorder %s21, 0
      %p83 = por %p81, %p82
      %s84 = ssub.s32 %s22, %s34
      %p85 = scmp.eq.s32.totalorder %s84, 0
      %s87 = sadd.s32 %s86, 1
      %s88 = scalar_select %p85, %s86, %s87
      %p91 = pneg %p85
      %p92 = scmp.eq.s32.totalorder %s15, 3
      %p93 = por %p91, %p92
      %p94 = scmp.ne.s32.totalorder %s86, %s89
      %p95 = scmp.eq.s32.totalorder %s15, 0
      %p96 = por %p94, %p95
      %p97 = scmp.ne.s32.totalorder %s86, %s89
      %p98 = scmp.eq.s32.totalorder %s20, 3
      %p99 = por %p97, %p98
      %p100 = scmp.ne.s32.totalorder %s89, %s90
      %p101 = scmp.eq.s32.totalorder %s20, 0
      %p102 = por %p100, %p101
      %p103 = scmp.ne.s32.totalorder %s89, %s90
      %p104 = scmp.eq.s32.totalorder %s21, 3
      %p105 = por %p103, %p104
      %p107 = scmp.ne.s32.totalorder %s90, %s106
      %p108 = scmp.eq.s32.totalorder %s21, 0
      %p109 = por %p107, %p108
      %p110 = scmp.le.s32.totalorder 1, %s15
      %p111 = scmp.lt.s32.totalorder %s15, 5
      %p112 = pnand %p110, %p111
      %p113 = pneg %p112
      // Predicated region
      $region9: #{spatial_attention_forward.1} parent=5 // pred_check
        _
      $region10: #{spatial_attention_forward.1} parent=5 // pred_check_branch
        %115 = sbr.rel (%p112) target = $region12
      $region11: #{spatial_attention_forward.1} parent=5 // pred_region
        %s116 = ssub.s32 %s15, 1
        // Predicated region
        $region13: #{spatial_attention_forward.1} parent=11 // pred_check
          %p117 = pneg %p76
        $region14: #{spatial_attention_forward.1} parent=11 // pred_check_branch
          %119 = sbr.rel (%p117) target = $region16
        $region15: #{spatial_attention_forward.1} parent=11 // pred_region
          %s121 = ssub.s32 16, 16
          %122 = vsyncadd [#allocation7], %s121
          %s124 = sshll.u32 %s1, 4
          %s125 = int_to_ptr.vmem [resolvable:$true] %s124
          %127 = dma.vmem_to_smem %s125, 16, [#allocation8], [#allocation7]
        $region16: #{spatial_attention_forward.1} parent=11 // pred_fallthru
          _
      $region12: #{spatial_attention_forward.1} parent=5 // pred_fallthru
        _
      %p128 = scmp.lt.s32.totalorder %s15, 4
      // Predicated region
      $region17: #{spatial_attention_forward.1} parent=5 // pred_check
        %p129 = pneg %p128
      $region18: #{spatial_attention_forward.1} parent=5 // pred_check_branch
        %131 = sbr.rel (%p129) target = $region20
      $region19: #{spatial_attention_forward.1} parent=5 // pred_region
        // Predicated region
        $region21: #{spatial_attention_forward.1} parent=19 // pred_check
          %p132 = pneg %p49
        $region22: #{spatial_attention_forward.1} parent=19 // pred_check_branch
          %134 = sbr.rel (%p132) target = $region24
        $region23: #{spatial_attention_forward.1} parent=19 // pred_region
          %s135 = sand.u32 %s39, 1
          %s136 = scalar_lea.sflag [#allocation5], %s135
          %s137 = sand.u32 %s39, 1
          %s138 = smul.addr %s137, 128
          %s139 = scalar_lea.vmem [#allocation4], %s138
          %s140 = smul.u32 8, %s23
          %s142 = ssub.s32 2048, 2048
          %143 = vsyncadd %s136, %s142
          %s144 = smul.addr %s140, 2
          %s145 = smul.addr %s22, 32
          %s146 = sadd.s32 %s144, %s145
          %s147 = smul.addr %s146, 128
          %s148 = scalar_lea.hbm %s0, %s147
          %s149 = sshll.u32 %s139, 4
          %s150 = int_to_ptr.vmem [resolvable:$true] %s149
          %155 = dma.hbm_to_vmem [thread:$0]  %s148, 2048, %s150, %s136, 128, 128, 8
        $region24: #{spatial_attention_forward.1} parent=19 // pred_fallthru
          _
      $region20: #{spatial_attention_forward.1} parent=5 // pred_fallthru
        _
      %p156 = scmp.le.s32.totalorder 1, %s15
      %p157 = scmp.lt.s32.totalorder %s15, 5
      %p158 = pnand %p156, %p157
      %p159 = pneg %p158
      // Predicated region
      $region25: #{spatial_attention_forward.1} parent=5 // pred_check
        _
      $region26: #{spatial_attention_forward.1} parent=5 // pred_check_branch
        %161 = sbr.rel (%p158) target = $region28
      $region27: #{spatial_attention_forward.1} parent=5 // pred_region
        %s162 = ssub.s32 %s15, 1
        %s163 = sand.u32 %s42, 1
        %s164 = scalar_lea.sflag [#allocation5], %s163
        %s165 = sand.u32 %s42, 1
        %s166 = smul.addr %s165, 128
        %s167 = scalar_lea.vmem [#allocation4], %s166
        // Predicated region
        $region29: #{spatial_attention_forward.1} parent=27 // pred_check
          %p168 = pneg %p55
        $region30: #{spatial_attention_forward.1} parent=27 // pred_check_branch
          %170 = sbr.rel (%p168) target = $region32
        $region31: #{spatial_attention_forward.1} parent=27 // pred_region
          %171 = dma.done %s164, 2048
        $region32: #{spatial_attention_forward.1} parent=27 // pred_fallthru
          _
        // Predicated region
        $region33: #{spatial_attention_forward.1} parent=27 // pred_check
          %p172 = pneg %p76
        $region34: #{spatial_attention_forward.1} parent=27 // pred_check_branch
          %174 = sbr.rel (%p172) target = $region36
        $region35: #{spatial_attention_forward.1} parent=27 // pred_region
          %175 = dma.done [#allocation7], 16
        $region36: #{spatial_attention_forward.1} parent=27 // pred_fallthru
          _
        %176 = sfence
        %s177 = sand.u32 %s42, 1
        %s178 = scalar_lea.sflag [#allocation5], %s177
        %s179 = sand.u32 %s42, 1
        %s180 = smul.addr %s179, 128
        %s181 = scalar_lea.vmem [#allocation4], %s180
        %p182 = pneg %p55
        %p183 = pneg %p52
        %p184 = pneg %p76
        %p185 = pneg %p73
        %p186 = pneg %p102
        %p187 = pneg %p99
        %s188 = sand.u32 %s89, 1
        %s189 = scalar_lea.sflag [#allocation6], %s188
        %s190 = sand.u32 %s89, 1
        %s191 = smul.addr %s190, 16
        %s192 = scalar_lea.vmem [#allocation9], %s191
        %s193 = smul.u32 8, %s25
        %p194 = scmp.eq.s32.totalorder %s25, 0
        // Predicated region
        $region37: #{spatial_attention_forward.1} parent=27 // pred_check
          %p195 = pneg %p194
        $region38: #{spatial_attention_forward.1} parent=27 // pred_check_branch
          %197 = sbr.rel (%p195) target = $region40
        $region39: #{spatial_attention_forward.1} parent=27 // pred_region
          %vm198 = vcmask 179200
          %199 = vst.msk [vmem:[#allocation2] sm:$0xff] %vm198, 0.0
          %200 = vst.msk [vmem:[#allocation2 + $0x8] sm:$0xff] %vm198, 0.0
          %vm201 = vcmask 177152
          %202 = vst.msk [vmem:[#allocation2 + $0x10] sm:$0x3f] %vm201, 0.0
          %203 = vst.msk [vmem:[#allocation3] sm:$0xff] %vm198, 0.0
          %204 = vst.msk [vmem:[#allocation3 + $0x8] sm:$0xff] %vm198, 0.0
          %205 = vst.msk [vmem:[#allocation3 + $0x10] sm:$0x3f] %vm201, 0.0
          %vm206 = vcmask 154648
          %207 = vst.msk [vmem:[#allocation3 + $0x3] sm:$0xff] %vm206, -inf
          %208 = vst.msk [vmem:[#allocation3 + $0xb] sm:$0xff] %vm206, -inf
        $region40: #{spatial_attention_forward.1} parent=27 // pred_fallthru
          _
        %v209 = vld [vmem:[#allocation2 + $0x3] sm:$0xff]
        %v210 = vld [vmem:[#allocation2 + $0xb] sm:$0xff]
        %v211 = vld [vmem:[#allocation3 + $0x3] sm:$0xff]
        %v212 = vld [vmem:[#allocation3 + $0xb] sm:$0xff]
        loop: start=0, step=1, limit=8
        $region41: #{spatial_attention_forward.1} parent=27 // loop_pre_header
          _
        $region42: #{spatial_attention_forward.1} parent=27 // loop_header
          %s214 = sphi 0, %s218
          %p215 = scmp.ge.s32.totalorder %s214, 8
          %v219 = vphi %v209, %v235
          %v220 = vphi %v210, %v236
          %v221 = vphi %v211, %v237
          %v222 = vphi %v212, %v238
        $region43: #{spatial_attention_forward.1} parent=27 // loop_header_branch
          %217 = sbr.rel (%p215) target = $region47
        $region44: #{spatial_attention_forward.1} parent=27 // loop_body
          %s223 = smul.u32 %s214, 16
          %s224 = scalar_lea.vmem %s167, %s223 [#allocation4]
          %v225 = vld [vmem:[%s224] sm:$0xff]
          %v226 = vld [vmem:[%s224 + $0x8] sm:$0xff]
          %229 = vrot.lane.b32.xlu0 %v225, 3
          %v230 = vpop.permute.xlu0 %229
          %231 = vrot.lane.b32.xlu0 %v226, 3
          %v232 = vpop.permute.xlu0 %231
          %v235 = vadd.f32 %v219, %v230
          %v236 = vadd.f32 %v220, %v232
          %v237 = vmax.f32 %v221, %v230
          %v238 = vmax.f32 %v222, %v232
        $region45: #{spatial_attention_forward.1} parent=27 // loop_footer
          %s218 = sadd.s32 1, %s214
        $region46: #{spatial_attention_forward.1} parent=27 // loop_footer_branch
          %213 = sbr.rel target = $region42
        $region47: #{spatial_attention_forward.1} parent=27 // loop_exit
          _
        %vm239 = vcmask 154648
        %240 = vst.msk [vmem:[#allocation2 + $0x3] sm:$0xff] %vm239, %v219
        %241 = vst.msk [vmem:[#allocation2 + $0xb] sm:$0xff] %vm239, %v220
        %242 = vst.msk [vmem:[#allocation3 + $0x3] sm:$0xff] %vm239, %v221
        %243 = vst.msk [vmem:[#allocation3 + $0xb] sm:$0xff] %vm239, %v222
        %p244 = scmp.eq.s32.totalorder %s25, 1
        // Predicated region
        $region48: #{spatial_attention_forward.1} parent=27 // pred_check
          %p245 = pneg %p244
        $region49: #{spatial_attention_forward.1} parent=27 // pred_check_branch
          %247 = sbr.rel (%p245) target = $region51
        $region50: #{spatial_attention_forward.1} parent=27 // pred_region
          %v248 = vld [vmem:[#allocation2] sm:$0xff]
          %v249 = vld [vmem:[#allocation2 + $0x8] sm:$0xff]
          %v250 = vld [vmem:[#allocation2 + $0x10] sm:$0x3f]
          %v251 = vmul.f32 %v248, 0.0625
          %v252 = vmul.f32 %v249, 0.0625
          %v253 = vmul.f32 %v250, 0.0625
          %v254 = vld [vmem:[#allocation3] sm:$0xff]
          %v255 = vld [vmem:[#allocation3 + $0x8] sm:$0xff]
          %v256 = vld [vmem:[#allocation3 + $0x10] sm:$0x3f]
          %s257 = sld [smem:[#allocation8]]
          %v258 = vstv %s257
          %v259 = vmul.f32 %v258, %v251
          %v260 = vmul.f32 %v258, %v252
          %v261 = vadd.f32 %v259, 0.0
          %v262 = vadd.f32 %v260, 0.0
          %s263 = sld [smem:[#allocation8 + $0x7]]
          %v264 = vstv %s263
          %v265 = vmul.f32 %v264, %v251
          %v266 = vmul.f32 %v264, %v252
          %v267 = vmul.f32 %v264, %v253
          %vm271 = vcmask 1046528
          %v272 = vrot.slane %v265, 1
          %v273 = vrot.slane %v266, 1
          %v274 = vsel %vm271, %v272, %v273
          %v275 = vrot.slane %v267, 1
          %v276 = vsel %vm271, %v273, %v275
          %v279 = vadd.f32 %v261, %v274
          %v280 = vadd.f32 %v262, %v276
          %s281 = sld [smem:[#allocation8 + $0xe]]
          %v282 = vstv %s281
          %v283 = vmul.f32 %v282, %v251
          %v284 = vmul.f32 %v282, %v252
          %v285 = vmul.f32 %v282, %v253
          %vm289 = vcmask 1045504
          %v290 = vrot.slane %v283, 2
          %v291 = vrot.slane %v284, 2
          %v292 = vsel %vm289, %v290, %v291
          %v293 = vrot.slane %v285, 2
          %v294 = vsel %vm289, %v291, %v293
          %v297 = vadd.f32 %v279, %v292
          %v298 = vadd.f32 %v280, %v294
          %s299 = sld [smem:[#allocation8 + $0x15]]
          %v300 = vstv %s299
          %v301 = vmul.f32 %v300, %v251
          %v302 = vmul.f32 %v300, %v252
          %v303 = vmul.f32 %v300, %v253
          %vm307 = vcmask 1044480
          %v308 = vrot.slane %v301, 3
          %v309 = vrot.slane %v302, 3
          %v310 = vsel %vm307, %v308, %v309
          %v311 = vrot.slane %v303, 3
          %v312 = vsel %vm307, %v309, %v311
          %v315 = vadd.f32 %v297, %v310
          %v316 = vadd.f32 %v298, %v312
          %s317 = sld [smem:[#allocation8 + $0x1c]]
          %v318 = vstv %s317
          %v319 = vmul.f32 %v318, %v251
          %v320 = vmul.f32 %v318, %v252
          %v321 = vmul.f32 %v318, %v253
          %vm325 = vcmask 1043456
          %v326 = vrot.slane %v319, 4
          %v327 = vrot.slane %v320, 4
          %v328 = vsel %vm325, %v326, %v327
          %v329 = vrot.slane %v321, 4
          %v330 = vsel %vm325, %v327, %v329
          %v333 = vadd.f32 %v315, %v328
          %v334 = vadd.f32 %v316, %v330
          %s335 = sld [smem:[#allocation8 + $0x23]]
          %v336 = vstv %s335
          %v337 = vmul.f32 %v336, %v251
          %v338 = vmul.f32 %v336, %v252
          %v339 = vmul.f32 %v336, %v253
          %vm343 = vcmask 1042432
          %v344 = vrot.slane %v337, 5
          %v345 = vrot.slane %v338, 5
          %v346 = vsel %vm343, %v344, %v345
          %v347 = vrot.slane %v339, 5
          %v348 = vsel %vm343, %v345, %v347
          %v351 = vadd.f32 %v333, %v346
          %v352 = vadd.f32 %v334, %v348
          %s353 = sld [smem:[#allocation8 + $0x2a]]
          %v354 = vstv %s353
          %v355 = vmul.f32 %v354, %v251
          %v356 = vmul.f32 %v354, %v252
          %v357 = vmul.f32 %v354, %v253
          %vm361 = vcmask 1041408
          %v362 = vrot.slane %v355, 6
          %v363 = vrot.slane %v356, 6
          %v364 = vsel %vm361, %v362, %v363
          %v365 = vrot.slane %v357, 6
          %v366 = vsel %vm361, %v363, %v365
          %v369 = vadd.f32 %v351, %v364
          %v370 = vadd.f32 %v352, %v366
          %s371 = sld [smem:[#allocation8 + $0x1]]
          %v372 = vstv %s371
          %v373 = vmul.f32 %v372, %v251
          %v374 = vmul.f32 %v372, %v252
          %377 = vrot.lane.b32.xlu0 %v373, 127
          %v378 = vpop.permute.xlu0 %377
          %379 = vrot.lane.b32.xlu0 %v374, 127
          %v380 = vpop.permute.xlu0 %379
          %v383 = vadd.f32 %v369, %v378
          %v384 = vadd.f32 %v370, %v380
          %s385 = sld [smem:[#allocation8 + $0x8]]
          %v386 = vstv %s385
          %v387 = vmul.f32 %v386, %v251
          %v388 = vmul.f32 %v386, %v252
          %v389 = vmul.f32 %v386, %v253
          %v393 = vrot.slane %v387, 1
          %v394 = vrot.slane %v388, 1
          %v395 = vsel %vm271, %v393, %v394
          %v396 = vrot.slane %v389, 1
          %v397 = vsel %vm271, %v394, %v396
          %398 = vrot.lane.b32.xlu0 %v395, 127
          %v399 = vpop.permute.xlu0 %398
          %400 = vrot.lane.b32.xlu0 %v397, 127
          %v401 = vpop.permute.xlu0 %400
          %v404 = vadd.f32 %v383, %v399
          %v405 = vadd.f32 %v384, %v401
          %s406 = sld [smem:[#allocation8 + $0xf]]
          %v407 = vstv %s406
          %v408 = vmul.f32 %v407, %v251
          %v409 = vmul.f32 %v407, %v252
          %v410 = vmul.f32 %v407, %v253
          %v414 = vrot.slane %v408, 2
          %v415 = vrot.slane %v409, 2
          %v416 = vsel %vm289, %v414, %v415
          %v417 = vrot.slane %v410, 2
          %v418 = vsel %vm289, %v415, %v417
          %419 = vrot.lane.b32.xlu0 %v416, 127
          %v420 = vpop.permute.xlu0 %419
          %421 = vrot.lane.b32.xlu0 %v418, 127
          %v422 = vpop.permute.xlu0 %421
          %v425 = vadd.f32 %v404, %v420
          %v426 = vadd.f32 %v405, %v422
          %s427 = sld [smem:[#allocation8 + $0x16]]
          %v428 = vstv %s427
          %v429 = vmul.f32 %v428, %v251
          %v430 = vmul.f32 %v428, %v252
          %v431 = vmul.f32 %v428, %v253
          %v435 = vrot.slane %v429, 3
          %v436 = vrot.slane %v430, 3
          %v437 = vsel %vm307, %v435, %v436
          %v438 = vrot.slane %v431, 3
          %v439 = vsel %vm307, %v436, %v438
          %440 = vrot.lane.b32.xlu0 %v437, 127
          %v441 = vpop.permute.xlu0 %440
          %442 = vrot.lane.b32.xlu0 %v439, 127
          %v443 = vpop.permute.xlu0 %442
          %v446 = vadd.f32 %v425, %v441
          %v447 = vadd.f32 %v426, %v443
          %s448 = sld [smem:[#allocation8 + $0x1d]]
          %v449 = vstv %s448
          %v450 = vmul.f32 %v449, %v251
          %v451 = vmul.f32 %v449, %v252
          %v452 = vmul.f32 %v449, %v253
          %v456 = vrot.slane %v450, 4
          %v457 = vrot.slane %v451, 4
          %v458 = vsel %vm325, %v456, %v457
          %v459 = vrot.slane %v452, 4
          %v460 = vsel %vm325, %v457, %v459
          %461 = vrot.lane.b32.xlu0 %v458, 127
          %v462 = vpop.permute.xlu0 %461
          %463 = vrot.lane.b32.xlu0 %v460, 127
          %v464 = vpop.permute.xlu0 %463
          %v467 = vadd.f32 %v446, %v462
          %v468 = vadd.f32 %v447, %v464
          %s469 = sld [smem:[#allocation8 + $0x24]]
          %v470 = vstv %s469
          %v471 = vmul.f32 %v470, %v251
          %v472 = vmul.f32 %v470, %v252
          %v473 = vmul.f32 %v470, %v253
          %v477 = vrot.slane %v471, 5
          %v478 = vrot.slane %v472, 5
          %v479 = vsel %vm343, %v477, %v478
          %v480 = vrot.slane %v473, 5
          %v481 = vsel %vm343, %v478, %v480
          %482 = vrot.lane.b32.xlu0 %v479, 127
          %v483 = vpop.permute.xlu0 %482
          %484 = vrot.lane.b32.xlu0 %v481, 127
          %v485 = vpop.permute.xlu0 %484
          %v488 = vadd.f32 %v467, %v483
          %v489 = vadd.f32 %v468, %v485
          %s490 = sld [smem:[#allocation8 + $0x2b]]
          %v491 = vstv %s490
          %v492 = vmul.f32 %v491, %v251
          %v493 = vmul.f32 %v491, %v252
          %v494 = vmul.f32 %v491, %v253
          %v498 = vrot.slane %v492, 6
          %v499 = vrot.slane %v493, 6
          %v500 = vsel %vm361, %v498, %v499
          %v501 = vrot.slane %v494, 6
          %v502 = vsel %vm361, %v499, %v501
          %503 = vrot.lane.b32.xlu0 %v500, 127
          %v504 = vpop.permute.xlu0 %503
          %505 = vrot.lane.b32.xlu0 %v502, 127
          %v506 = vpop.permute.xlu0 %505
          %v509 = vadd.f32 %v488, %v504
          %v510 = vadd.f32 %v489, %v506
          %s511 = sld [smem:[#allocation8 + $0x2]]
          %v512 = vstv %s511
          %v513 = vmul.f32 %v512, %v251
          %v514 = vmul.f32 %v512, %v252
          %517 = vrot.lane.b32.xlu0 %v513, 126
          %v518 = vpop.permute.xlu0 %517
          %519 = vrot.lane.b32.xlu0 %v514, 126
          %v520 = vpop.permute.xlu0 %519
          %v523 = vadd.f32 %v509, %v518
          %v524 = vadd.f32 %v510, %v520
          %s525 = sld [smem:[#allocation8 + $0x9]]
          %v526 = vstv %s525
          %v527 = vmul.f32 %v526, %v251
          %v528 = vmul.f32 %v526, %v252
          %v529 = vmul.f32 %v526, %v253
          %v533 = vrot.slane %v527, 1
          %v534 = vrot.slane %v528, 1
          %v535 = vsel %vm271, %v533, %v534
          %v536 = vrot.slane %v529, 1
          %v537 = vsel %vm271, %v534, %v536
          %538 = vrot.lane.b32.xlu0 %v535, 126
          %v539 = vpop.permute.xlu0 %538
          %540 = vrot.lane.b32.xlu0 %v537, 126
          %v541 = vpop.permute.xlu0 %540
          %v544 = vadd.f32 %v523, %v539
          %v545 = vadd.f32 %v524, %v541
          %s546 = sld [smem:[#allocation8 + $0x10]]
          %v547 = vstv %s546
          %v548 = vmul.f32 %v547, %v251
          %v549 = vmul.f32 %v547, %v252
          %v550 = vmul.f32 %v547, %v253
          %v554 = vrot.slane %v548, 2
          %v555 = vrot.slane %v549, 2
          %v556 = vsel %vm289, %v554, %v555
          %v557 = vrot.slane %v550, 2
          %v558 = vsel %vm289, %v555, %v557
          %559 = vrot.lane.b32.xlu0 %v556, 126
          %v560 = vpop.permute.xlu0 %559
          %561 = vrot.lane.b32.xlu0 %v558, 126
          %v562 = vpop.permute.xlu0 %561
          %v565 = vadd.f32 %v544, %v560
          %v566 = vadd.f32 %v545, %v562
          %s567 = sld [smem:[#allocation8 + $0x17]]
          %v568 = vstv %s567
          %v569 = vmul.f32 %v568, %v251
          %v570 = vmul.f32 %v568, %v252
          %v571 = vmul.f32 %v568, %v253
          %v575 = vrot.slane %v569, 3
          %v576 = vrot.slane %v570, 3
          %v577 = vsel %vm307, %v575, %v576
          %v578 = vrot.slane %v571, 3
          %v579 = vsel %vm307, %v576, %v578
          %580 = vrot.lane.b32.xlu0 %v577, 126
          %v581 = vpop.permute.xlu0 %580
          %582 = vrot.lane.b32.xlu0 %v579, 126
          %v583 = vpop.permute.xlu0 %582
          %v586 = vadd.f32 %v565, %v581
          %v587 = vadd.f32 %v566, %v583
          %s588 = sld [smem:[#allocation8 + $0x1e]]
          %v589 = vstv %s588
          %v590 = vmul.f32 %v589, %v251
          %v591 = vmul.f32 %v589, %v252
          %v592 = vmul.f32 %v589, %v253
          %v596 = vrot.slane %v590, 4
          %v597 = vrot.slane %v591, 4
          %v598 = vsel %vm325, %v596, %v597
          %v599 = vrot.slane %v592, 4
          %v600 = vsel %vm325, %v597, %v599
          %601 = vrot.lane.b32.xlu0 %v598, 126
          %v602 = vpop.permute.xlu0 %601
          %603 = vrot.lane.b32.xlu0 %v600, 126
          %v604 = vpop.permute.xlu0 %603
          %v607 = vadd.f32 %v586, %v602
          %v608 = vadd.f32 %v587, %v604
          %s609 = sld [smem:[#allocation8 + $0x25]]
          %v610 = vstv %s609
          %v611 = vmul.f32 %v610, %v251
          %v612 = vmul.f32 %v610, %v252
          %v613 = vmul.f32 %v610, %v253
          %v617 = vrot.slane %v611, 5
          %v618 = vrot.slane %v612, 5
          %v619 = vsel %vm343, %v617, %v618
          %v620 = vrot.slane %v613, 5
          %v621 = vsel %vm343, %v618, %v620
          %622 = vrot.lane.b32.xlu0 %v619, 126
          %v623 = vpop.permute.xlu0 %622
          %624 = vrot.lane.b32.xlu0 %v621, 126
          %v625 = vpop.permute.xlu0 %624
          %v628 = vadd.f32 %v607, %v623
          %v629 = vadd.f32 %v608, %v625
          %s630 = sld [smem:[#allocation8 + $0x2c]]
          %v631 = vstv %s630
          %v632 = vmul.f32 %v631, %v251
          %v633 = vmul.f32 %v631, %v252
          %v634 = vmul.f32 %v631, %v253
          %v638 = vrot.slane %v632, 6
          %v639 = vrot.slane %v633, 6
          %v640 = vsel %vm361, %v638, %v639
          %v641 = vrot.slane %v634, 6
          %v642 = vsel %vm361, %v639, %v641
          %643 = vrot.lane.b32.xlu0 %v640, 126
          %v644 = vpop.permute.xlu0 %643
          %645 = vrot.lane.b32.xlu0 %v642, 126
          %v646 = vpop.permute.xlu0 %645
          %v649 = vadd.f32 %v628, %v644
          %v650 = vadd.f32 %v629, %v646
          %s651 = sld [smem:[#allocation8 + $0x3]]
          %v652 = vstv %s651
          %v653 = vmul.f32 %v652, %v251
          %v654 = vmul.f32 %v652, %v252
          %657 = vrot.lane.b32.xlu0 %v653, 125
          %v658 = vpop.permute.xlu0 %657
          %659 = vrot.lane.b32.xlu0 %v654, 125
          %v660 = vpop.permute.xlu0 %659
          %v663 = vadd.f32 %v649, %v658
          %v664 = vadd.f32 %v650, %v660
          %s665 = sld [smem:[#allocation8 + $0xa]]
          %v666 = vstv %s665
          %v667 = vmul.f32 %v666, %v251
          %v668 = vmul.f32 %v666, %v252
          %v669 = vmul.f32 %v666, %v253
          %v673 = vrot.slane %v667, 1
          %v674 = vrot.slane %v668, 1
          %v675 = vsel %vm271, %v673, %v674
          %v676 = vrot.slane %v669, 1
          %v677 = vsel %vm271, %v674, %v676
          %678 = vrot.lane.b32.xlu0 %v675, 125
          %v679 = vpop.permute.xlu0 %678
          %680 = vrot.lane.b32.xlu0 %v677, 125
          %v681 = vpop.permute.xlu0 %680
          %v684 = vadd.f32 %v663, %v679
          %v685 = vadd.f32 %v664, %v681
          %s686 = sld [smem:[#allocation8 + $0x11]]
          %v687 = vstv %s686
          %v688 = vmul.f32 %v687, %v251
          %v689 = vmul.f32 %v687, %v252
          %v690 = vmul.f32 %v687, %v253
          %v694 = vrot.slane %v688, 2
          %v695 = vrot.slane %v689, 2
          %v696 = vsel %vm289, %v694, %v695
          %v697 = vrot.slane %v690, 2
          %v698 = vsel %vm289, %v695, %v697
          %699 = vrot.lane.b32.xlu0 %v696, 125
          %v700 = vpop.permute.xlu0 %699
          %701 = vrot.lane.b32.xlu0 %v698, 125
          %v702 = vpop.permute.xlu0 %701
          %v705 = vadd.f32 %v684, %v700
          %v706 = vadd.f32 %v685, %v702
          %s707 = sld [smem:[#allocation8 + $0x18]]
          %v708 = vstv %s707
          %v709 = vmul.f32 %v708, %v251
          %v710 = vmul.f32 %v708, %v252
          %v711 = vmul.f32 %v708, %v253
          %v715 = vrot.slane %v709, 3
          %v716 = vrot.slane %v710, 3
          %v717 = vsel %vm307, %v715, %v716
          %v718 = vrot.slane %v711, 3
          %v719 = vsel %vm307, %v716, %v718
          %720 = vrot.lane.b32.xlu0 %v717, 125
          %v721 = vpop.permute.xlu0 %720
          %722 = vrot.lane.b32.xlu0 %v719, 125
          %v723 = vpop.permute.xlu0 %722
          %v726 = vadd.f32 %v705, %v721
          %v727 = vadd.f32 %v706, %v723
          %s728 = sld [smem:[#allocation8 + $0x1f]]
          %v729 = vstv %s728
          %v730 = vmul.f32 %v729, %v251
          %v731 = vmul.f32 %v729, %v252
          %v732 = vmul.f32 %v729, %v253
          %v736 = vrot.slane %v730, 4
          %v737 = vrot.slane %v731, 4
          %v738 = vsel %vm325, %v736, %v737
          %v739 = vrot.slane %v732, 4
          %v740 = vsel %vm325, %v737, %v739
          %741 = vrot.lane.b32.xlu0 %v738, 125
          %v742 = vpop.permute.xlu0 %741
          %743 = vrot.lane.b32.xlu0 %v740, 125
          %v744 = vpop.permute.xlu0 %743
          %v747 = vadd.f32 %v726, %v742
          %v748 = vadd.f32 %v727, %v744
          %s749 = sld [smem:[#allocation8 + $0x26]]
          %v750 = vstv %s749
          %v751 = vmul.f32 %v750, %v251
          %v752 = vmul.f32 %v750, %v252
          %v753 = vmul.f32 %v750, %v253
          %v757 = vrot.slane %v751, 5
          %v758 = vrot.slane %v752, 5
          %v759 = vsel %vm343, %v757, %v758
          %v760 = vrot.slane %v753, 5
          %v761 = vsel %vm343, %v758, %v760
          %762 = vrot.lane.b32.xlu0 %v759, 125
          %v763 = vpop.permute.xlu0 %762
          %764 = vrot.lane.b32.xlu0 %v761, 125
          %v765 = vpop.permute.xlu0 %764
          %v768 = vadd.f32 %v747, %v763
          %v769 = vadd.f32 %v748, %v765
          %s770 = sld [smem:[#allocation8 + $0x2d]]
          %v771 = vstv %s770
          %v772 = vmul.f32 %v771, %v251
          %v773 = vmul.f32 %v771, %v252
          %v774 = vmul.f32 %v771, %v253
          %v778 = vrot.slane %v772, 6
          %v779 = vrot.slane %v773, 6
          %v780 = vsel %vm361, %v778, %v779
          %v781 = vrot.slane %v774, 6
          %v782 = vsel %vm361, %v779, %v781
          %783 = vrot.lane.b32.xlu0 %v780, 125
          %v784 = vpop.permute.xlu0 %783
          %785 = vrot.lane.b32.xlu0 %v782, 125
          %v786 = vpop.permute.xlu0 %785
          %v789 = vadd.f32 %v768, %v784
          %v790 = vadd.f32 %v769, %v786
          %s791 = sld [smem:[#allocation8 + $0x4]]
          %v792 = vstv %s791
          %v793 = vmul.f32 %v792, %v251
          %v794 = vmul.f32 %v792, %v252
          %797 = vrot.lane.b32.xlu0 %v793, 124
          %v798 = vpop.permute.xlu0 %797
          %799 = vrot.lane.b32.xlu0 %v794, 124
          %v800 = vpop.permute.xlu0 %799
          %v803 = vadd.f32 %v789, %v798
          %v804 = vadd.f32 %v790, %v800
          %s805 = sld [smem:[#allocation8 + $0xb]]
          %v806 = vstv %s805
          %v807 = vmul.f32 %v806, %v251
          %v808 = vmul.f32 %v806, %v252
          %v809 = vmul.f32 %v806, %v253
          %v813 = vrot.slane %v807, 1
          %v814 = vrot.slane %v808, 1
          %v815 = vsel %vm271, %v813, %v814
          %v816 = vrot.slane %v809, 1
          %v817 = vsel %vm271, %v814, %v816
          %818 = vrot.lane.b32.xlu0 %v815, 124
          %v819 = vpop.permute.xlu0 %818
          %820 = vrot.lane.b32.xlu0 %v817, 124
          %v821 = vpop.permute.xlu0 %820
          %v824 = vadd.f32 %v803, %v819
          %v825 = vadd.f32 %v804, %v821
          %s826 = sld [smem:[#allocation8 + $0x12]]
          %v827 = vstv %s826
          %v828 = vmul.f32 %v827, %v251
          %v829 = vmul.f32 %v827, %v252
          %v830 = vmul.f32 %v827, %v253
          %v834 = vrot.slane %v828, 2
          %v835 = vrot.slane %v829, 2
          %v836 = vsel %vm289, %v834, %v835
          %v837 = vrot.slane %v830, 2
          %v838 = vsel %vm289, %v835, %v837
          %839 = vrot.lane.b32.xlu0 %v836, 124
          %v840 = vpop.permute.xlu0 %839
          %841 = vrot.lane.b32.xlu0 %v838, 124
          %v842 = vpop.permute.xlu0 %841
          %v845 = vadd.f32 %v824, %v840
          %v846 = vadd.f32 %v825, %v842
          %s847 = sld [smem:[#allocation8 + $0x19]]
          %v848 = vstv %s847
          %v849 = vmul.f32 %v848, %v251
          %v850 = vmul.f32 %v848, %v252
          %v851 = vmul.f32 %v848, %v253
          %v855 = vrot.slane %v849, 3
          %v856 = vrot.slane %v850, 3
          %v857 = vsel %vm307, %v855, %v856
          %v858 = vrot.slane %v851, 3
          %v859 = vsel %vm307, %v856, %v858
          %860 = vrot.lane.b32.xlu0 %v857, 124
          %v861 = vpop.permute.xlu0 %860
          %862 = vrot.lane.b32.xlu0 %v859, 124
          %v863 = vpop.permute.xlu0 %862
          %v866 = vadd.f32 %v845, %v861
          %v867 = vadd.f32 %v846, %v863
          %s868 = sld [smem:[#allocation8 + $0x20]]
          %v869 = vstv %s868
          %v870 = vmul.f32 %v869, %v251
          %v871 = vmul.f32 %v869, %v252
          %v872 = vmul.f32 %v869, %v253
          %v876 = vrot.slane %v870, 4
          %v877 = vrot.slane %v871, 4
          %v878 = vsel %vm325, %v876, %v877
          %v879 = vrot.slane %v872, 4
          %v880 = vsel %vm325, %v877, %v879
          %881 = vrot.lane.b32.xlu0 %v878, 124
          %v882 = vpop.permute.xlu0 %881
          %883 = vrot.lane.b32.xlu0 %v880, 124
          %v884 = vpop.permute.xlu0 %883
          %v887 = vadd.f32 %v866, %v882
          %v888 = vadd.f32 %v867, %v884
          %s889 = sld [smem:[#allocation8 + $0x27]]
          %v890 = vstv %s889
          %v891 = vmul.f32 %v890, %v251
          %v892 = vmul.f32 %v890, %v252
          %v893 = vmul.f32 %v890, %v253
          %v897 = vrot.slane %v891, 5
          %v898 = vrot.slane %v892, 5
          %v899 = vsel %vm343, %v897, %v898
          %v900 = vrot.slane %v893, 5
          %v901 = vsel %vm343, %v898, %v900
          %902 = vrot.lane.b32.xlu0 %v899, 124
          %v903 = vpop.permute.xlu0 %902
          %904 = vrot.lane.b32.xlu0 %v901, 124
          %v905 = vpop.permute.xlu0 %904
          %v908 = vadd.f32 %v887, %v903
          %v909 = vadd.f32 %v888, %v905
          %s910 = sld [smem:[#allocation8 + $0x2e]]
          %v911 = vstv %s910
          %v912 = vmul.f32 %v911, %v251
          %v913 = vmul.f32 %v911, %v252
          %v914 = vmul.f32 %v911, %v253
          %v918 = vrot.slane %v912, 6
          %v919 = vrot.slane %v913, 6
          %v920 = vsel %vm361, %v918, %v919
          %v921 = vrot.slane %v914, 6
          %v922 = vsel %vm361, %v919, %v921
          %923 = vrot.lane.b32.xlu0 %v920, 124
          %v924 = vpop.permute.xlu0 %923
          %925 = vrot.lane.b32.xlu0 %v922, 124
          %v926 = vpop.permute.xlu0 %925
          %v929 = vadd.f32 %v908, %v924
          %v930 = vadd.f32 %v909, %v926
          %s931 = sld [smem:[#allocation8 + $0x5]]
          %v932 = vstv %s931
          %v933 = vmul.f32 %v932, %v251
          %v934 = vmul.f32 %v932, %v252
          %937 = vrot.lane.b32.xlu0 %v933, 123
          %v938 = vpop.permute.xlu0 %937
          %939 = vrot.lane.b32.xlu0 %v934, 123
          %v940 = vpop.permute.xlu0 %939
          %v943 = vadd.f32 %v929, %v938
          %v944 = vadd.f32 %v930, %v940
          %s945 = sld [smem:[#allocation8 + $0xc]]
          %v946 = vstv %s945
          %v947 = vmul.f32 %v946, %v251
          %v948 = vmul.f32 %v946, %v252
          %v949 = vmul.f32 %v946, %v253
          %v953 = vrot.slane %v947, 1
          %v954 = vrot.slane %v948, 1
          %v955 = vsel %vm271, %v953, %v954
          %v956 = vrot.slane %v949, 1
          %v957 = vsel %vm271, %v954, %v956
          %958 = vrot.lane.b32.xlu0 %v955, 123
          %v959 = vpop.permute.xlu0 %958
          %960 = vrot.lane.b32.xlu0 %v957, 123
          %v961 = vpop.permute.xlu0 %960
          %v964 = vadd.f32 %v943, %v959
          %v965 = vadd.f32 %v944, %v961
          %s966 = sld [smem:[#allocation8 + $0x13]]
          %v967 = vstv %s966
          %v968 = vmul.f32 %v967, %v251
          %v969 = vmul.f32 %v967, %v252
          %v970 = vmul.f32 %v967, %v253
          %v974 = vrot.slane %v968, 2
          %v975 = vrot.slane %v969, 2
          %v976 = vsel %vm289, %v974, %v975
          %v977 = vrot.slane %v970, 2
          %v978 = vsel %vm289, %v975, %v977
          %979 = vrot.lane.b32.xlu0 %v976, 123
          %v980 = vpop.permute.xlu0 %979
          %981 = vrot.lane.b32.xlu0 %v978, 123
          %v982 = vpop.permute.xlu0 %981
          %v985 = vadd.f32 %v964, %v980
          %v986 = vadd.f32 %v965, %v982
          %s987 = sld [smem:[#allocation8 + $0x1a]]
          %v988 = vstv %s987
          %v989 = vmul.f32 %v988, %v251
          %v990 = vmul.f32 %v988, %v252
          %v991 = vmul.f32 %v988, %v253
          %v995 = vrot.slane %v989, 3
          %v996 = vrot.slane %v990, 3
          %v997 = vsel %vm307, %v995, %v996
          %v998 = vrot.slane %v991, 3
          %v999 = vsel %vm307, %v996, %v998
          %1000 = vrot.lane.b32.xlu0 %v997, 123
          %v1001 = vpop.permute.xlu0 %1000
          %1002 = vrot.lane.b32.xlu0 %v999, 123
          %v1003 = vpop.permute.xlu0 %1002
          %v1006 = vadd.f32 %v985, %v1001
          %v1007 = vadd.f32 %v986, %v1003
          %s1008 = sld [smem:[#allocation8 + $0x21]]
          %v1009 = vstv %s1008
          %v1010 = vmul.f32 %v1009, %v251
          %v1011 = vmul.f32 %v1009, %v252
          %v1012 = vmul.f32 %v1009, %v253
          %v1016 = vrot.slane %v1010, 4
          %v1017 = vrot.slane %v1011, 4
          %v1018 = vsel %vm325, %v1016, %v1017
          %v1019 = vrot.slane %v1012, 4
          %v1020 = vsel %vm325, %v1017, %v1019
          %1021 = vrot.lane.b32.xlu0 %v1018, 123
          %v1022 = vpop.permute.xlu0 %1021
          %1023 = vrot.lane.b32.xlu0 %v1020, 123
          %v1024 = vpop.permute.xlu0 %1023
          %v1027 = vadd.f32 %v1006, %v1022
          %v1028 = vadd.f32 %v1007, %v1024
          %s1029 = sld [smem:[#allocation8 + $0x28]]
          %v1030 = vstv %s1029
          %v1031 = vmul.f32 %v1030, %v251
          %v1032 = vmul.f32 %v1030, %v252
          %v1033 = vmul.f32 %v1030, %v253
          %v1037 = vrot.slane %v1031, 5
          %v1038 = vrot.slane %v1032, 5
          %v1039 = vsel %vm343, %v1037, %v1038
          %v1040 = vrot.slane %v1033, 5
          %v1041 = vsel %vm343, %v1038, %v1040
          %1042 = vrot.lane.b32.xlu0 %v1039, 123
          %v1043 = vpop.permute.xlu0 %1042
          %1044 = vrot.lane.b32.xlu0 %v1041, 123
          %v1045 = vpop.permute.xlu0 %1044
          %v1048 = vadd.f32 %v1027, %v1043
          %v1049 = vadd.f32 %v1028, %v1045
          %s1050 = sld [smem:[#allocation8 + $0x2f]]
          %v1051 = vstv %s1050
          %v1052 = vmul.f32 %v1051, %v251
          %v1053 = vmul.f32 %v1051, %v252
          %v1054 = vmul.f32 %v1051, %v253
          %v1058 = vrot.slane %v1052, 6
          %v1059 = vrot.slane %v1053, 6
          %v1060 = vsel %vm361, %v1058, %v1059
          %v1061 = vrot.slane %v1054, 6
          %v1062 = vsel %vm361, %v1059, %v1061
          %1063 = vrot.lane.b32.xlu0 %v1060, 123
          %v1064 = vpop.permute.xlu0 %1063
          %1065 = vrot.lane.b32.xlu0 %v1062, 123
          %v1066 = vpop.permute.xlu0 %1065
          %v1069 = vadd.f32 %v1048, %v1064
          %v1070 = vadd.f32 %v1049, %v1066
          %s1071 = sld [smem:[#allocation8 + $0x6]]
          %v1072 = vstv %s1071
          %v1073 = vmul.f32 %v1072, %v251
          %v1074 = vmul.f32 %v1072, %v252
          %1077 = vrot.lane.b32.xlu0 %v1073, 122
          %v1078 = vpop.permute.xlu0 %1077
          %1079 = vrot.lane.b32.xlu0 %v1074, 122
          %v1080 = vpop.permute.xlu0 %1079
          %v1083 = vadd.f32 %v1069, %v1078
          %v1084 = vadd.f32 %v1070, %v1080
          %s1085 = sld [smem:[#allocation8 + $0xd]]
          %v1086 = vstv %s1085
          %v1087 = vmul.f32 %v1086, %v251
          %v1088 = vmul.f32 %v1086, %v252
          %v1089 = vmul.f32 %v1086, %v253
          %v1093 = vrot.slane %v1087, 1
          %v1094 = vrot.slane %v1088, 1
          %v1095 = vsel %vm271, %v1093, %v1094
          %v1096 = vrot.slane %v1089, 1
          %v1097 = vsel %vm271, %v1094, %v1096
          %1098 = vrot.lane.b32.xlu0 %v1095, 122
          %v1099 = vpop.permute.xlu0 %1098
          %1100 = vrot.lane.b32.xlu0 %v1097, 122
          %v1101 = vpop.permute.xlu0 %1100
          %v1104 = vadd.f32 %v1083, %v1099
          %v1105 = vadd.f32 %v1084, %v1101
          %s1106 = sld [smem:[#allocation8 + $0x14]]
          %v1107 = vstv %s1106
          %v1108 = vmul.f32 %v1107, %v251
          %v1109 = vmul.f32 %v1107, %v252
          %v1110 = vmul.f32 %v1107, %v253
          %v1114 = vrot.slane %v1108, 2
          %v1115 = vrot.slane %v1109, 2
          %v1116 = vsel %vm289, %v1114, %v1115
          %v1117 = vrot.slane %v1110, 2
          %v1118 = vsel %vm289, %v1115, %v1117
          %1119 = vrot.lane.b32.xlu0 %v1116, 122
          %v1120 = vpop.permute.xlu0 %1119
          %1121 = vrot.lane.b32.xlu0 %v1118, 122
          %v1122 = vpop.permute.xlu0 %1121
          %v1125 = vadd.f32 %v1104, %v1120
          %v1126 = vadd.f32 %v1105, %v1122
          %s1127 = sld [smem:[#allocation8 + $0x1b]]
          %v1128 = vstv %s1127
          %v1129 = vmul.f32 %v1128, %v251
          %v1130 = vmul.f32 %v1128, %v252
          %v1131 = vmul.f32 %v1128, %v253
          %v1135 = vrot.slane %v1129, 3
          %v1136 = vrot.slane %v1130, 3
          %v1137 = vsel %vm307, %v1135, %v1136
          %v1138 = vrot.slane %v1131, 3
          %v1139 = vsel %vm307, %v1136, %v1138
          %1140 = vrot.lane.b32.xlu0 %v1137, 122
          %v1141 = vpop.permute.xlu0 %1140
          %1142 = vrot.lane.b32.xlu0 %v1139, 122
          %v1143 = vpop.permute.xlu0 %1142
          %v1146 = vadd.f32 %v1125, %v1141
          %v1147 = vadd.f32 %v1126, %v1143
          %s1148 = sld [smem:[#allocation8 + $0x22]]
          %v1149 = vstv %s1148
          %v1150 = vmul.f32 %v1149, %v251
          %v1151 = vmul.f32 %v1149, %v252
          %v1152 = vmul.f32 %v1149, %v253
          %v1156 = vrot.slane %v1150, 4
          %v1157 = vrot.slane %v1151, 4
          %v1158 = vsel %vm325, %v1156, %v1157
          %v1159 = vrot.slane %v1152, 4
          %v1160 = vsel %vm325, %v1157, %v1159
          %1161 = vrot.lane.b32.xlu0 %v1158, 122
          %v1162 = vpop.permute.xlu0 %1161
          %1163 = vrot.lane.b32.xlu0 %v1160, 122
          %v1164 = vpop.permute.xlu0 %1163
          %v1167 = vadd.f32 %v1146, %v1162
          %v1168 = vadd.f32 %v1147, %v1164
          %s1169 = sld [smem:[#allocation8 + $0x29]]
          %v1170 = vstv %s1169
          %v1171 = vmul.f32 %v1170, %v251
          %v1172 = vmul.f32 %v1170, %v252
          %v1173 = vmul.f32 %v1170, %v253
          %v1177 = vrot.slane %v1171, 5
          %v1178 = vrot.slane %v1172, 5
          %v1179 = vsel %vm343, %v1177, %v1178
          %v1180 = vrot.slane %v1173, 5
          %v1181 = vsel %vm343, %v1178, %v1180
          %1182 = vrot.lane.b32.xlu0 %v1179, 122
          %v1183 = vpop.permute.xlu0 %1182
          %1184 = vrot.lane.b32.xlu0 %v1181, 122
          %v1185 = vpop.permute.xlu0 %1184
          %v1188 = vadd.f32 %v1167, %v1183
          %v1189 = vadd.f32 %v1168, %v1185
          %s1190 = sld [smem:[#allocation8 + $0x30]]
          %v1191 = vstv %s1190
          %v1192 = vmul.f32 %v1191, %v251
          %v1193 = vmul.f32 %v1191, %v252
          %v1194 = vmul.f32 %v1191, %v253
          %v1198 = vrot.slane %v1192, 6
          %v1199 = vrot.slane %v1193, 6
          %v1200 = vsel %vm361, %v1198, %v1199
          %v1201 = vrot.slane %v1194, 6
          %v1202 = vsel %vm361, %v1199, %v1201
          %1203 = vrot.lane.b32.xlu0 %v1200, 122
          %v1204 = vpop.permute.xlu0 %1203
          %1205 = vrot.lane.b32.xlu0 %v1202, 122
          %v1206 = vpop.permute.xlu0 %1205
          %v1209 = vadd.f32 %v1188, %v1204
          %v1210 = vadd.f32 %v1189, %v1206
          %s1211 = sld [smem:[#allocation8 + $0x31]]
          %v1212 = vstv %s1211
          %v1213 = vmul.f32 %v1212, %v254
          %v1214 = vmul.f32 %v1212, %v255
          %v1215 = vadd.f32 %v1209, %v1213
          %v1216 = vadd.f32 %v1210, %v1214
          %s1217 = sld [smem:[#allocation8 + $0x38]]
          %v1218 = vstv %s1217
          %v1219 = vmul.f32 %v1218, %v254
          %v1220 = vmul.f32 %v1218, %v255
          %v1221 = vmul.f32 %v1218, %v256
          %v1225 = vrot.slane %v1219, 1
          %v1226 = vrot.slane %v1220, 1
          %v1227 = vsel %vm271, %v1225, %v1226
          %v1228 = vrot.slane %v1221, 1
          %v1229 = vsel %vm271, %v1226, %v1228
          %v1232 = vadd.f32 %v1215, %v1227
          %v1233 = vadd.f32 %v1216, %v1229
          %s1234 = sld [smem:[#allocation8 + $0x3f]]
          %v1235 = vstv %s1234
          %v1236 = vmul.f32 %v1235, %v254
          %v1237 = vmul.f32 %v1235, %v255
          %v1238 = vmul.f32 %v1235, %v256
          %v1242 = vrot.slane %v1236, 2
          %v1243 = vrot.slane %v1237, 2
          %v1244 = vsel %vm289, %v1242, %v1243
          %v1245 = vrot.slane %v1238, 2
          %v1246 = vsel %vm289, %v1243, %v1245
          %v1249 = vadd.f32 %v1232, %v1244
          %v1250 = vadd.f32 %v1233, %v1246
          %s1251 = sld [smem:[#allocation8 + $0x46]]
          %v1252 = vstv %s1251
          %v1253 = vmul.f32 %v1252, %v254
          %v1254 = vmul.f32 %v1252, %v255
          %v1255 = vmul.f32 %v1252, %v256
          %v1259 = vrot.slane %v1253, 3
          %v1260 = vrot.slane %v1254, 3
          %v1261 = vsel %vm307, %v1259, %v1260
          %v1262 = vrot.slane %v1255, 3
          %v1263 = vsel %vm307, %v1260, %v1262
          %v1266 = vadd.f32 %v1249, %v1261
          %v1267 = vadd.f32 %v1250, %v1263
          %s1268 = sld [smem:[#allocation8 + $0x4d]]
          %v1269 = vstv %s1268
          %v1270 = vmul.f32 %v1269, %v254
          %v1271 = vmul.f32 %v1269, %v255
          %v1272 = vmul.f32 %v1269, %v256
          %v1276 = vrot.slane %v1270, 4
          %v1277 = vrot.slane %v1271, 4
          %v1278 = vsel %vm325, %v1276, %v1277
          %v1279 = vrot.slane %v1272, 4
          %v1280 = vsel %vm325, %v1277, %v1279
          %v1283 = vadd.f32 %v1266, %v1278
          %v1284 = vadd.f32 %v1267, %v1280
          %s1285 = sld [smem:[#allocation8 + $0x54]]
          %v1286 = vstv %s1285
          %v1287 = vmul.f32 %v1286, %v254
          %v1288 = vmul.f32 %v1286, %v255
          %v1289 = vmul.f32 %v1286, %v256
          %v1293 = vrot.slane %v1287, 5
          %v1294 = vrot.slane %v1288, 5
          %v1295 = vsel %vm343, %v1293, %v1294
          %v1296 = vrot.slane %v1289, 5
          %v1297 = vsel %vm343, %v1294, %v1296
          %v1300 = vadd.f32 %v1283, %v1295
          %v1301 = vadd.f32 %v1284, %v1297
          %s1302 = sld [smem:[#allocation8 + $0x5b]]
          %v1303 = vstv %s1302
          %v1304 = vmul.f32 %v1303, %v254
          %v1305 = vmul.f32 %v1303, %v255
          %v1306 = vmul.f32 %v1303, %v256
          %v1310 = vrot.slane %v1304, 6
          %v1311 = vrot.slane %v1305, 6
          %v1312 = vsel %vm361, %v1310, %v1311
          %v1313 = vrot.slane %v1306, 6
          %v1314 = vsel %vm361, %v1311, %v1313
          %v1317 = vadd.f32 %v1300, %v1312
          %v1318 = vadd.f32 %v1301, %v1314
          %s1319 = sld [smem:[#allocation8 + $0x32]]
          %v1320 = vstv %s1319
          %v1321 = vmul.f32 %v1320, %v254
          %v1322 = vmul.f32 %v1320, %v255
          %1325 = vrot.lane.b32.xlu0 %v1321, 127
          %v1326 = vpop.permute.xlu0 %1325
          %1327 = vrot.lane.b32.xlu0 %v1322, 127
          %v1328 = vpop.permute.xlu0 %1327
          %v1331 = vadd.f32 %v1317, %v1326
          %v1332 = vadd.f32 %v1318, %v1328
          %s1333 = sld [smem:[#allocation8 + $0x39]]
          %v1334 = vstv %s1333
          %v1335 = vmul.f32 %v1334, %v254
          %v1336 = vmul.f32 %v1334, %v255
          %v1337 = vmul.f32 %v1334, %v256
          %v1341 = vrot.slane %v1335, 1
          %v1342 = vrot.slane %v1336, 1
          %v1343 = vsel %vm271, %v1341, %v1342
          %v1344 = vrot.slane %v1337, 1
          %v1345 = vsel %vm271, %v1342, %v1344
          %1346 = vrot.lane.b32.xlu0 %v1343, 127
          %v1347 = vpop.permute.xlu0 %1346
          %1348 = vrot.lane.b32.xlu0 %v1345, 127
          %v1349 = vpop.permute.xlu0 %1348
          %v1352 = vadd.f32 %v1331, %v1347
          %v1353 = vadd.f32 %v1332, %v1349
          %s1354 = sld [smem:[#allocation8 + $0x40]]
          %v1355 = vstv %s1354
          %v1356 = vmul.f32 %v1355, %v254
          %v1357 = vmul.f32 %v1355, %v255
          %v1358 = vmul.f32 %v1355, %v256
          %v1362 = vrot.slane %v1356, 2
          %v1363 = vrot.slane %v1357, 2
          %v1364 = vsel %vm289, %v1362, %v1363
          %v1365 = vrot.slane %v1358, 2
          %v1366 = vsel %vm289, %v1363, %v1365
          %1367 = vrot.lane.b32.xlu0 %v1364, 127
          %v1368 = vpop.permute.xlu0 %1367
          %1369 = vrot.lane.b32.xlu0 %v1366, 127
          %v1370 = vpop.permute.xlu0 %1369
          %v1373 = vadd.f32 %v1352, %v1368
          %v1374 = vadd.f32 %v1353, %v1370
          %s1375 = sld [smem:[#allocation8 + $0x47]]
          %v1376 = vstv %s1375
          %v1377 = vmul.f32 %v1376, %v254
          %v1378 = vmul.f32 %v1376, %v255
          %v1379 = vmul.f32 %v1376, %v256
          %v1383 = vrot.slane %v1377, 3
          %v1384 = vrot.slane %v1378, 3
          %v1385 = vsel %vm307, %v1383, %v1384
          %v1386 = vrot.slane %v1379, 3
          %v1387 = vsel %vm307, %v1384, %v1386
          %1388 = vrot.lane.b32.xlu0 %v1385, 127
          %v1389 = vpop.permute.xlu0 %1388
          %1390 = vrot.lane.b32.xlu0 %v1387, 127
          %v1391 = vpop.permute.xlu0 %1390
          %v1394 = vadd.f32 %v1373, %v1389
          %v1395 = vadd.f32 %v1374, %v1391
          %s1396 = sld [smem:[#allocation8 + $0x4e]]
          %v1397 = vstv %s1396
          %v1398 = vmul.f32 %v1397, %v254
          %v1399 = vmul.f32 %v1397, %v255
          %v1400 = vmul.f32 %v1397, %v256
          %v1404 = vrot.slane %v1398, 4
          %v1405 = vrot.slane %v1399, 4
          %v1406 = vsel %vm325, %v1404, %v1405
          %v1407 = vrot.slane %v1400, 4
          %v1408 = vsel %vm325, %v1405, %v1407
          %1409 = vrot.lane.b32.xlu0 %v1406, 127
          %v1410 = vpop.permute.xlu0 %1409
          %1411 = vrot.lane.b32.xlu0 %v1408, 127
          %v1412 = vpop.permute.xlu0 %1411
          %v1415 = vadd.f32 %v1394, %v1410
          %v1416 = vadd.f32 %v1395, %v1412
          %s1417 = sld [smem:[#allocation8 + $0x55]]
          %v1418 = vstv %s1417
          %v1419 = vmul.f32 %v1418, %v254
          %v1420 = vmul.f32 %v1418, %v255
          %v1421 = vmul.f32 %v1418, %v256
          %v1425 = vrot.slane %v1419, 5
          %v1426 = vrot.slane %v1420, 5
          %v1427 = vsel %vm343, %v1425, %v1426
          %v1428 = vrot.slane %v1421, 5
          %v1429 = vsel %vm343, %v1426, %v1428
          %1430 = vrot.lane.b32.xlu0 %v1427, 127
          %v1431 = vpop.permute.xlu0 %1430
          %1432 = vrot.lane.b32.xlu0 %v1429, 127
          %v1433 = vpop.permute.xlu0 %1432
          %v1436 = vadd.f32 %v1415, %v1431
          %v1437 = vadd.f32 %v1416, %v1433
          %s1438 = sld [smem:[#allocation8 + $0x5c]]
          %v1439 = vstv %s1438
          %v1440 = vmul.f32 %v1439, %v254
          %v1441 = vmul.f32 %v1439, %v255
          %v1442 = vmul.f32 %v1439, %v256
          %v1446 = vrot.slane %v1440, 6
          %v1447 = vrot.slane %v1441, 6
          %v1448 = vsel %vm361, %v1446, %v1447
          %v1449 = vrot.slane %v1442, 6
          %v1450 = vsel %vm361, %v1447, %v1449
          %1451 = vrot.lane.b32.xlu0 %v1448, 127
          %v1452 = vpop.permute.xlu0 %1451
          %1453 = vrot.lane.b32.xlu0 %v1450, 127
          %v1454 = vpop.permute.xlu0 %1453
          %v1457 = vadd.f32 %v1436, %v1452
          %v1458 = vadd.f32 %v1437, %v1454
          %s1459 = sld [smem:[#allocation8 + $0x33]]
          %v1460 = vstv %s1459
          %v1461 = vmul.f32 %v1460, %v254
          %v1462 = vmul.f32 %v1460, %v255
          %1465 = vrot.lane.b32.xlu0 %v1461, 126
          %v1466 = vpop.permute.xlu0 %1465
          %1467 = vrot.lane.b32.xlu0 %v1462, 126
          %v1468 = vpop.permute.xlu0 %1467
          %v1471 = vadd.f32 %v1457, %v1466
          %v1472 = vadd.f32 %v1458, %v1468
          %s1473 = sld [smem:[#allocation8 + $0x3a]]
          %v1474 = vstv %s1473
          %v1475 = vmul.f32 %v1474, %v254
          %v1476 = vmul.f32 %v1474, %v255
          %v1477 = vmul.f32 %v1474, %v256
          %v1481 = vrot.slane %v1475, 1
          %v1482 = vrot.slane %v1476, 1
          %v1483 = vsel %vm271, %v1481, %v1482
          %v1484 = vrot.slane %v1477, 1
          %v1485 = vsel %vm271, %v1482, %v1484
          %1486 = vrot.lane.b32.xlu0 %v1483, 126
          %v1487 = vpop.permute.xlu0 %1486
          %1488 = vrot.lane.b32.xlu0 %v1485, 126
          %v1489 = vpop.permute.xlu0 %1488
          %v1492 = vadd.f32 %v1471, %v1487
          %v1493 = vadd.f32 %v1472, %v1489
          %s1494 = sld [smem:[#allocation8 + $0x41]]
          %v1495 = vstv %s1494
          %v1496 = vmul.f32 %v1495, %v254
          %v1497 = vmul.f32 %v1495, %v255
          %v1498 = vmul.f32 %v1495, %v256
          %v1502 = vrot.slane %v1496, 2
          %v1503 = vrot.slane %v1497, 2
          %v1504 = vsel %vm289, %v1502, %v1503
          %v1505 = vrot.slane %v1498, 2
          %v1506 = vsel %vm289, %v1503, %v1505
          %1507 = vrot.lane.b32.xlu0 %v1504, 126
          %v1508 = vpop.permute.xlu0 %1507
          %1509 = vrot.lane.b32.xlu0 %v1506, 126
          %v1510 = vpop.permute.xlu0 %1509
          %v1513 = vadd.f32 %v1492, %v1508
          %v1514 = vadd.f32 %v1493, %v1510
          %s1515 = sld [smem:[#allocation8 + $0x48]]
          %v1516 = vstv %s1515
          %v1517 = vmul.f32 %v1516, %v254
          %v1518 = vmul.f32 %v1516, %v255
          %v1519 = vmul.f32 %v1516, %v256
          %v1523 = vrot.slane %v1517, 3
          %v1524 = vrot.slane %v1518, 3
          %v1525 = vsel %vm307, %v1523, %v1524
          %v1526 = vrot.slane %v1519, 3
          %v1527 = vsel %vm307, %v1524, %v1526
          %1528 = vrot.lane.b32.xlu0 %v1525, 126
          %v1529 = vpop.permute.xlu0 %1528
          %1530 = vrot.lane.b32.xlu0 %v1527, 126
          %v1531 = vpop.permute.xlu0 %1530
          %v1534 = vadd.f32 %v1513, %v1529
          %v1535 = vadd.f32 %v1514, %v1531
          %s1536 = sld [smem:[#allocation8 + $0x4f]]
          %v1537 = vstv %s1536
          %v1538 = vmul.f32 %v1537, %v254
          %v1539 = vmul.f32 %v1537, %v255
          %v1540 = vmul.f32 %v1537, %v256
          %v1544 = vrot.slane %v1538, 4
          %v1545 = vrot.slane %v1539, 4
          %v1546 = vsel %vm325, %v1544, %v1545
          %v1547 = vrot.slane %v1540, 4
          %v1548 = vsel %vm325, %v1545, %v1547
          %1549 = vrot.lane.b32.xlu0 %v1546, 126
          %v1550 = vpop.permute.xlu0 %1549
          %1551 = vrot.lane.b32.xlu0 %v1548, 126
          %v1552 = vpop.permute.xlu0 %1551
          %v1555 = vadd.f32 %v1534, %v1550
          %v1556 = vadd.f32 %v1535, %v1552
          %s1557 = sld [smem:[#allocation8 + $0x56]]
          %v1558 = vstv %s1557
          %v1559 = vmul.f32 %v1558, %v254
          %v1560 = vmul.f32 %v1558, %v255
          %v1561 = vmul.f32 %v1558, %v256
          %v1565 = vrot.slane %v1559, 5
          %v1566 = vrot.slane %v1560, 5
          %v1567 = vsel %vm343, %v1565, %v1566
          %v1568 = vrot.slane %v1561, 5
          %v1569 = vsel %vm343, %v1566, %v1568
          %1570 = vrot.lane.b32.xlu0 %v1567, 126
          %v1571 = vpop.permute.xlu0 %1570
          %1572 = vrot.lane.b32.xlu0 %v1569, 126
          %v1573 = vpop.permute.xlu0 %1572
          %v1576 = vadd.f32 %v1555, %v1571
          %v1577 = vadd.f32 %v1556, %v1573
          %s1578 = sld [smem:[#allocation8 + $0x5d]]
          %v1579 = vstv %s1578
          %v1580 = vmul.f32 %v1579, %v254
          %v1581 = vmul.f32 %v1579, %v255
          %v1582 = vmul.f32 %v1579, %v256
          %v1586 = vrot.slane %v1580, 6
          %v1587 = vrot.slane %v1581, 6
          %v1588 = vsel %vm361, %v1586, %v1587
          %v1589 = vrot.slane %v1582, 6
          %v1590 = vsel %vm361, %v1587, %v1589
          %1591 = vrot.lane.b32.xlu0 %v1588, 126
          %v1592 = vpop.permute.xlu0 %1591
          %1593 = vrot.lane.b32.xlu0 %v1590, 126
          %v1594 = vpop.permute.xlu0 %1593
          %v1597 = vadd.f32 %v1576, %v1592
          %v1598 = vadd.f32 %v1577, %v1594
          %s1599 = sld [smem:[#allocation8 + $0x34]]
          %v1600 = vstv %s1599
          %v1601 = vmul.f32 %v1600, %v254
          %v1602 = vmul.f32 %v1600, %v255
          %1605 = vrot.lane.b32.xlu0 %v1601, 125
          %v1606 = vpop.permute.xlu0 %1605
          %1607 = vrot.lane.b32.xlu0 %v1602, 125
          %v1608 = vpop.permute.xlu0 %1607
          %v1611 = vadd.f32 %v1597, %v1606
          %v1612 = vadd.f32 %v1598, %v1608
          %s1613 = sld [smem:[#allocation8 + $0x3b]]
          %v1614 = vstv %s1613
          %v1615 = vmul.f32 %v1614, %v254
          %v1616 = vmul.f32 %v1614, %v255
          %v1617 = vmul.f32 %v1614, %v256
          %v1621 = vrot.slane %v1615, 1
          %v1622 = vrot.slane %v1616, 1
          %v1623 = vsel %vm271, %v1621, %v1622
          %v1624 = vrot.slane %v1617, 1
          %v1625 = vsel %vm271, %v1622, %v1624
          %1626 = vrot.lane.b32.xlu0 %v1623, 125
          %v1627 = vpop.permute.xlu0 %1626
          %1628 = vrot.lane.b32.xlu0 %v1625, 125
          %v1629 = vpop.permute.xlu0 %1628
          %v1632 = vadd.f32 %v1611, %v1627
          %v1633 = vadd.f32 %v1612, %v1629
          %s1634 = sld [smem:[#allocation8 + $0x42]]
          %v1635 = vstv %s1634
          %v1636 = vmul.f32 %v1635, %v254
          %v1637 = vmul.f32 %v1635, %v255
          %v1638 = vmul.f32 %v1635, %v256
          %v1642 = vrot.slane %v1636, 2
          %v1643 = vrot.slane %v1637, 2
          %v1644 = vsel %vm289, %v1642, %v1643
          %v1645 = vrot.slane %v1638, 2
          %v1646 = vsel %vm289, %v1643, %v1645
          %1647 = vrot.lane.b32.xlu0 %v1644, 125
          %v1648 = vpop.permute.xlu0 %1647
          %1649 = vrot.lane.b32.xlu0 %v1646, 125
          %v1650 = vpop.permute.xlu0 %1649
          %v1653 = vadd.f32 %v1632, %v1648
          %v1654 = vadd.f32 %v1633, %v1650
          %s1655 = sld [smem:[#allocation8 + $0x49]]
          %v1656 = vstv %s1655
          %v1657 = vmul.f32 %v1656, %v254
          %v1658 = vmul.f32 %v1656, %v255
          %v1659 = vmul.f32 %v1656, %v256
          %v1663 = vrot.slane %v1657, 3
          %v1664 = vrot.slane %v1658, 3
          %v1665 = vsel %vm307, %v1663, %v1664
          %v1666 = vrot.slane %v1659, 3
          %v1667 = vsel %vm307, %v1664, %v1666
          %1668 = vrot.lane.b32.xlu0 %v1665, 125
          %v1669 = vpop.permute.xlu0 %1668
          %1670 = vrot.lane.b32.xlu0 %v1667, 125
          %v1671 = vpop.permute.xlu0 %1670
          %v1674 = vadd.f32 %v1653, %v1669
          %v1675 = vadd.f32 %v1654, %v1671
          %s1676 = sld [smem:[#allocation8 + $0x50]]
          %v1677 = vstv %s1676
          %v1678 = vmul.f32 %v1677, %v254
          %v1679 = vmul.f32 %v1677, %v255
          %v1680 = vmul.f32 %v1677, %v256
          %v1684 = vrot.slane %v1678, 4
          %v1685 = vrot.slane %v1679, 4
          %v1686 = vsel %vm325, %v1684, %v1685
          %v1687 = vrot.slane %v1680, 4
          %v1688 = vsel %vm325, %v1685, %v1687
          %1689 = vrot.lane.b32.xlu0 %v1686, 125
          %v1690 = vpop.permute.xlu0 %1689
          %1691 = vrot.lane.b32.xlu0 %v1688, 125
          %v1692 = vpop.permute.xlu0 %1691
          %v1695 = vadd.f32 %v1674, %v1690
          %v1696 = vadd.f32 %v1675, %v1692
          %s1697 = sld [smem:[#allocation8 + $0x57]]
          %v1698 = vstv %s1697
          %v1699 = vmul.f32 %v1698, %v254
          %v1700 = vmul.f32 %v1698, %v255
          %v1701 = vmul.f32 %v1698, %v256
          %v1705 = vrot.slane %v1699, 5
          %v1706 = vrot.slane %v1700, 5
          %v1707 = vsel %vm343, %v1705, %v1706
          %v1708 = vrot.slane %v1701, 5
          %v1709 = vsel %vm343, %v1706, %v1708
          %1710 = vrot.lane.b32.xlu0 %v1707, 125
          %v1711 = vpop.permute.xlu0 %1710
          %1712 = vrot.lane.b32.xlu0 %v1709, 125
          %v1713 = vpop.permute.xlu0 %1712
          %v1716 = vadd.f32 %v1695, %v1711
          %v1717 = vadd.f32 %v1696, %v1713
          %s1718 = sld [smem:[#allocation8 + $0x5e]]
          %v1719 = vstv %s1718
          %v1720 = vmul.f32 %v1719, %v254
          %v1721 = vmul.f32 %v1719, %v255
          %v1722 = vmul.f32 %v1719, %v256
          %v1726 = vrot.slane %v1720, 6
          %v1727 = vrot.slane %v1721, 6
          %v1728 = vsel %vm361, %v1726, %v1727
          %v1729 = vrot.slane %v1722, 6
          %v1730 = vsel %vm361, %v1727, %v1729
          %1731 = vrot.lane.b32.xlu0 %v1728, 125
          %v1732 = vpop.permute.xlu0 %1731
          %1733 = vrot.lane.b32.xlu0 %v1730, 125
          %v1734 = vpop.permute.xlu0 %1733
          %v1737 = vadd.f32 %v1716, %v1732
          %v1738 = vadd.f32 %v1717, %v1734
          %s1739 = sld [smem:[#allocation8 + $0x35]]
          %v1740 = vstv %s1739
          %v1741 = vmul.f32 %v1740, %v254
          %v1742 = vmul.f32 %v1740, %v255
          %1745 = vrot.lane.b32.xlu0 %v1741, 124
          %v1746 = vpop.permute.xlu0 %1745
          %1747 = vrot.lane.b32.xlu0 %v1742, 124
          %v1748 = vpop.permute.xlu0 %1747
          %v1751 = vadd.f32 %v1737, %v1746
          %v1752 = vadd.f32 %v1738, %v1748
          %s1753 = sld [smem:[#allocation8 + $0x3c]]
          %v1754 = vstv %s1753
          %v1755 = vmul.f32 %v1754, %v254
          %v1756 = vmul.f32 %v1754, %v255
          %v1757 = vmul.f32 %v1754, %v256
          %v1761 = vrot.slane %v1755, 1
          %v1762 = vrot.slane %v1756, 1
          %v1763 = vsel %vm271, %v1761, %v1762
          %v1764 = vrot.slane %v1757, 1
          %v1765 = vsel %vm271, %v1762, %v1764
          %1766 = vrot.lane.b32.xlu0 %v1763, 124
          %v1767 = vpop.permute.xlu0 %1766
          %1768 = vrot.lane.b32.xlu0 %v1765, 124
          %v1769 = vpop.permute.xlu0 %1768
          %v1772 = vadd.f32 %v1751, %v1767
          %v1773 = vadd.f32 %v1752, %v1769
          %s1774 = sld [smem:[#allocation8 + $0x43]]
          %v1775 = vstv %s1774
          %v1776 = vmul.f32 %v1775, %v254
          %v1777 = vmul.f32 %v1775, %v255
          %v1778 = vmul.f32 %v1775, %v256
          %v1782 = vrot.slane %v1776, 2
          %v1783 = vrot.slane %v1777, 2
          %v1784 = vsel %vm289, %v1782, %v1783
          %v1785 = vrot.slane %v1778, 2
          %v1786 = vsel %vm289, %v1783, %v1785
          %1787 = vrot.lane.b32.xlu0 %v1784, 124
          %v1788 = vpop.permute.xlu0 %1787
          %1789 = vrot.lane.b32.xlu0 %v1786, 124
          %v1790 = vpop.permute.xlu0 %1789
          %v1793 = vadd.f32 %v1772, %v1788
          %v1794 = vadd.f32 %v1773, %v1790
          %s1795 = sld [smem:[#allocation8 + $0x4a]]
          %v1796 = vstv %s1795
          %v1797 = vmul.f32 %v1796, %v254
          %v1798 = vmul.f32 %v1796, %v255
          %v1799 = vmul.f32 %v1796, %v256
          %v1803 = vrot.slane %v1797, 3
          %v1804 = vrot.slane %v1798, 3
          %v1805 = vsel %vm307, %v1803, %v1804
          %v1806 = vrot.slane %v1799, 3
          %v1807 = vsel %vm307, %v1804, %v1806
          %1808 = vrot.lane.b32.xlu0 %v1805, 124
          %v1809 = vpop.permute.xlu0 %1808
          %1810 = vrot.lane.b32.xlu0 %v1807, 124
          %v1811 = vpop.permute.xlu0 %1810
          %v1814 = vadd.f32 %v1793, %v1809
          %v1815 = vadd.f32 %v1794, %v1811
          %s1816 = sld [smem:[#allocation8 + $0x51]]
          %v1817 = vstv %s1816
          %v1818 = vmul.f32 %v1817, %v254
          %v1819 = vmul.f32 %v1817, %v255
          %v1820 = vmul.f32 %v1817, %v256
          %v1824 = vrot.slane %v1818, 4
          %v1825 = vrot.slane %v1819, 4
          %v1826 = vsel %vm325, %v1824, %v1825
          %v1827 = vrot.slane %v1820, 4
          %v1828 = vsel %vm325, %v1825, %v1827
          %1829 = vrot.lane.b32.xlu0 %v1826, 124
          %v1830 = vpop.permute.xlu0 %1829
          %1831 = vrot.lane.b32.xlu0 %v1828, 124
          %v1832 = vpop.permute.xlu0 %1831
          %v1835 = vadd.f32 %v1814, %v1830
          %v1836 = vadd.f32 %v1815, %v1832
          %s1837 = sld [smem:[#allocation8 + $0x58]]
          %v1838 = vstv %s1837
          %v1839 = vmul.f32 %v1838, %v254
          %v1840 = vmul.f32 %v1838, %v255
          %v1841 = vmul.f32 %v1838, %v256
          %v1845 = vrot.slane %v1839, 5
          %v1846 = vrot.slane %v1840, 5
          %v1847 = vsel %vm343, %v1845, %v1846
          %v1848 = vrot.slane %v1841, 5
          %v1849 = vsel %vm343, %v1846, %v1848
          %1850 = vrot.lane.b32.xlu0 %v1847, 124
          %v1851 = vpop.permute.xlu0 %1850
          %1852 = vrot.lane.b32.xlu0 %v1849, 124
          %v1853 = vpop.permute.xlu0 %1852
          %v1856 = vadd.f32 %v1835, %v1851
          %v1857 = vadd.f32 %v1836, %v1853
          %s1858 = sld [smem:[#allocation8 + $0x5f]]
          %v1859 = vstv %s1858
          %v1860 = vmul.f32 %v1859, %v254
          %v1861 = vmul.f32 %v1859, %v255
          %v1862 = vmul.f32 %v1859, %v256
          %v1866 = vrot.slane %v1860, 6
          %v1867 = vrot.slane %v1861, 6
          %v1868 = vsel %vm361, %v1866, %v1867
          %v1869 = vrot.slane %v1862, 6
          %v1870 = vsel %vm361, %v1867, %v1869
          %1871 = vrot.lane.b32.xlu0 %v1868, 124
          %v1872 = vpop.permute.xlu0 %1871
          %1873 = vrot.lane.b32.xlu0 %v1870, 124
          %v1874 = vpop.permute.xlu0 %1873
          %v1877 = vadd.f32 %v1856, %v1872
          %v1878 = vadd.f32 %v1857, %v1874
          %s1879 = sld [smem:[#allocation8 + $0x36]]
          %v1880 = vstv %s1879
          %v1881 = vmul.f32 %v1880, %v254
          %v1882 = vmul.f32 %v1880, %v255
          %1885 = vrot.lane.b32.xlu0 %v1881, 123
          %v1886 = vpop.permute.xlu0 %1885
          %1887 = vrot.lane.b32.xlu0 %v1882, 123
          %v1888 = vpop.permute.xlu0 %1887
          %v1891 = vadd.f32 %v1877, %v1886
          %v1892 = vadd.f32 %v1878, %v1888
          %s1893 = sld [smem:[#allocation8 + $0x3d]]
          %v1894 = vstv %s1893
          %v1895 = vmul.f32 %v1894, %v254
          %v1896 = vmul.f32 %v1894, %v255
          %v1897 = vmul.f32 %v1894, %v256
          %v1901 = vrot.slane %v1895, 1
          %v1902 = vrot.slane %v1896, 1
          %v1903 = vsel %vm271, %v1901, %v1902
          %v1904 = vrot.slane %v1897, 1
          %v1905 = vsel %vm271, %v1902, %v1904
          %1906 = vrot.lane.b32.xlu0 %v1903, 123
          %v1907 = vpop.permute.xlu0 %1906
          %1908 = vrot.lane.b32.xlu0 %v1905, 123
          %v1909 = vpop.permute.xlu0 %1908
          %v1912 = vadd.f32 %v1891, %v1907
          %v1913 = vadd.f32 %v1892, %v1909
          %s1914 = sld [smem:[#allocation8 + $0x44]]
          %v1915 = vstv %s1914
          %v1916 = vmul.f32 %v1915, %v254
          %v1917 = vmul.f32 %v1915, %v255
          %v1918 = vmul.f32 %v1915, %v256
          %v1922 = vrot.slane %v1916, 2
          %v1923 = vrot.slane %v1917, 2
          %v1924 = vsel %vm289, %v1922, %v1923
          %v1925 = vrot.slane %v1918, 2
          %v1926 = vsel %vm289, %v1923, %v1925
          %1927 = vrot.lane.b32.xlu0 %v1924, 123
          %v1928 = vpop.permute.xlu0 %1927
          %1929 = vrot.lane.b32.xlu0 %v1926, 123
          %v1930 = vpop.permute.xlu0 %1929
          %v1933 = vadd.f32 %v1912, %v1928
          %v1934 = vadd.f32 %v1913, %v1930
          %s1935 = sld [smem:[#allocation8 + $0x4b]]
          %v1936 = vstv %s1935
          %v1937 = vmul.f32 %v1936, %v254
          %v1938 = vmul.f32 %v1936, %v255
          %v1939 = vmul.f32 %v1936, %v256
          %v1943 = vrot.slane %v1937, 3
          %v1944 = vrot.slane %v1938, 3
          %v1945 = vsel %vm307, %v1943, %v1944
          %v1946 = vrot.slane %v1939, 3
          %v1947 = vsel %vm307, %v1944, %v1946
          %1948 = vrot.lane.b32.xlu0 %v1945, 123
          %v1949 = vpop.permute.xlu0 %1948
          %1950 = vrot.lane.b32.xlu0 %v1947, 123
          %v1951 = vpop.permute.xlu0 %1950
          %v1954 = vadd.f32 %v1933, %v1949
          %v1955 = vadd.f32 %v1934, %v1951
          %s1956 = sld [smem:[#allocation8 + $0x52]]
          %v1957 = vstv %s1956
          %v1958 = vmul.f32 %v1957, %v254
          %v1959 = vmul.f32 %v1957, %v255
          %v1960 = vmul.f32 %v1957, %v256
          %v1964 = vrot.slane %v1958, 4
          %v1965 = vrot.slane %v1959, 4
          %v1966 = vsel %vm325, %v1964, %v1965
          %v1967 = vrot.slane %v1960, 4
          %v1968 = vsel %vm325, %v1965, %v1967
          %1969 = vrot.lane.b32.xlu0 %v1966, 123
          %v1970 = vpop.permute.xlu0 %1969
          %1971 = vrot.lane.b32.xlu0 %v1968, 123
          %v1972 = vpop.permute.xlu0 %1971
          %v1975 = vadd.f32 %v1954, %v1970
          %v1976 = vadd.f32 %v1955, %v1972
          %s1977 = sld [smem:[#allocation8 + $0x59]]
          %v1978 = vstv %s1977
          %v1979 = vmul.f32 %v1978, %v254
          %v1980 = vmul.f32 %v1978, %v255
          %v1981 = vmul.f32 %v1978, %v256
          %v1985 = vrot.slane %v1979, 5
          %v1986 = vrot.slane %v1980, 5
          %v1987 = vsel %vm343, %v1985, %v1986
          %v1988 = vrot.slane %v1981, 5
          %v1989 = vsel %vm343, %v1986, %v1988
          %1990 = vrot.lane.b32.xlu0 %v1987, 123
          %v1991 = vpop.permute.xlu0 %1990
          %1992 = vrot.lane.b32.xlu0 %v1989, 123
          %v1993 = vpop.permute.xlu0 %1992
          %v1996 = vadd.f32 %v1975, %v1991
          %v1997 = vadd.f32 %v1976, %v1993
          %s1998 = sld [smem:[#allocation8 + $0x60]]
          %v1999 = vstv %s1998
          %v2000 = vmul.f32 %v1999, %v254
          %v2001 = vmul.f32 %v1999, %v255
          %v2002 = vmul.f32 %v1999, %v256
          %v2006 = vrot.slane %v2000, 6
          %v2007 = vrot.slane %v2001, 6
          %v2008 = vsel %vm361, %v2006, %v2007
          %v2009 = vrot.slane %v2002, 6
          %v2010 = vsel %vm361, %v2007, %v2009
          %2011 = vrot.lane.b32.xlu0 %v2008, 123
          %v2012 = vpop.permute.xlu0 %2011
          %2013 = vrot.lane.b32.xlu0 %v2010, 123
          %v2014 = vpop.permute.xlu0 %2013
          %v2017 = vadd.f32 %v1996, %v2012
          %v2018 = vadd.f32 %v1997, %v2014
          %s2019 = sld [smem:[#allocation8 + $0x37]]
          %v2020 = vstv %s2019
          %v2021 = vmul.f32 %v2020, %v254
          %v2022 = vmul.f32 %v2020, %v255
          %2025 = vrot.lane.b32.xlu0 %v2021, 122
          %v2026 = vpop.permute.xlu0 %2025
          %2027 = vrot.lane.b32.xlu0 %v2022, 122
          %v2028 = vpop.permute.xlu0 %2027
          %v2031 = vadd.f32 %v2017, %v2026
          %v2032 = vadd.f32 %v2018, %v2028
          %s2033 = sld [smem:[#allocation8 + $0x3e]]
          %v2034 = vstv %s2033
          %v2035 = vmul.f32 %v2034, %v254
          %v2036 = vmul.f32 %v2034, %v255
          %v2037 = vmul.f32 %v2034, %v256
          %v2041 = vrot.slane %v2035, 1
          %v2042 = vrot.slane %v2036, 1
          %v2043 = vsel %vm271, %v2041, %v2042
          %v2044 = vrot.slane %v2037, 1
          %v2045 = vsel %vm271, %v2042, %v2044
          %2046 = vrot.lane.b32.xlu0 %v2043, 122
          %v2047 = vpop.permute.xlu0 %2046
          %2048 = vrot.lane.b32.xlu0 %v2045, 122
          %v2049 = vpop.permute.xlu0 %2048
          %v2052 = vadd.f32 %v2031, %v2047
          %v2053 = vadd.f32 %v2032, %v2049
          %s2054 = sld [smem:[#allocation8 + $0x45]]
          %v2055 = vstv %s2054
          %v2056 = vmul.f32 %v2055, %v254
          %v2057 = vmul.f32 %v2055, %v255
          %v2058 = vmul.f32 %v2055, %v256
          %v2062 = vrot.slane %v2056, 2
          %v2063 = vrot.slane %v2057, 2
          %v2064 = vsel %vm289, %v2062, %v2063
          %v2065 = vrot.slane %v2058, 2
          %v2066 = vsel %vm289, %v2063, %v2065
          %2067 = vrot.lane.b32.xlu0 %v2064, 122
          %v2068 = vpop.permute.xlu0 %2067
          %2069 = vrot.lane.b32.xlu0 %v2066, 122
          %v2070 = vpop.permute.xlu0 %2069
          %v2073 = vadd.f32 %v2052, %v2068
          %v2074 = vadd.f32 %v2053, %v2070
          %s2075 = sld [smem:[#allocation8 + $0x4c]]
          %v2076 = vstv %s2075
          %v2077 = vmul.f32 %v2076, %v254
          %v2078 = vmul.f32 %v2076, %v255
          %v2079 = vmul.f32 %v2076, %v256
          %v2083 = vrot.slane %v2077, 3
          %v2084 = vrot.slane %v2078, 3
          %v2085 = vsel %vm307, %v2083, %v2084
          %v2086 = vrot.slane %v2079, 3
          %v2087 = vsel %vm307, %v2084, %v2086
          %2088 = vrot.lane.b32.xlu0 %v2085, 122
          %v2089 = vpop.permute.xlu0 %2088
          %2090 = vrot.lane.b32.xlu0 %v2087, 122
          %v2091 = vpop.permute.xlu0 %2090
          %v2094 = vadd.f32 %v2073, %v2089
          %v2095 = vadd.f32 %v2074, %v2091
          %s2096 = sld [smem:[#allocation8 + $0x53]]
          %v2097 = vstv %s2096
          %v2098 = vmul.f32 %v2097, %v254
          %v2099 = vmul.f32 %v2097, %v255
          %v2100 = vmul.f32 %v2097, %v256
          %v2104 = vrot.slane %v2098, 4
          %v2105 = vrot.slane %v2099, 4
          %v2106 = vsel %vm325, %v2104, %v2105
          %v2107 = vrot.slane %v2100, 4
          %v2108 = vsel %vm325, %v2105, %v2107
          %2109 = vrot.lane.b32.xlu0 %v2106, 122
          %v2110 = vpop.permute.xlu0 %2109
          %2111 = vrot.lane.b32.xlu0 %v2108, 122
          %v2112 = vpop.permute.xlu0 %2111
          %v2115 = vadd.f32 %v2094, %v2110
          %v2116 = vadd.f32 %v2095, %v2112
          %s2117 = sld [smem:[#allocation8 + $0x5a]]
          %v2118 = vstv %s2117
          %v2119 = vmul.f32 %v2118, %v254
          %v2120 = vmul.f32 %v2118, %v255
          %v2121 = vmul.f32 %v2118, %v256
          %v2125 = vrot.slane %v2119, 5
          %v2126 = vrot.slane %v2120, 5
          %v2127 = vsel %vm343, %v2125, %v2126
          %v2128 = vrot.slane %v2121, 5
          %v2129 = vsel %vm343, %v2126, %v2128
          %2130 = vrot.lane.b32.xlu0 %v2127, 122
          %v2131 = vpop.permute.xlu0 %2130
          %2132 = vrot.lane.b32.xlu0 %v2129, 122
          %v2133 = vpop.permute.xlu0 %2132
          %v2136 = vadd.f32 %v2115, %v2131
          %v2137 = vadd.f32 %v2116, %v2133
          %s2138 = sld [smem:[#allocation8 + $0x61]]
          %v2139 = vstv %s2138
          %v2140 = vmul.f32 %v2139, %v254
          %v2141 = vmul.f32 %v2139, %v255
          %v2142 = vmul.f32 %v2139, %v256
          %v2146 = vrot.slane %v2140, 6
          %v2147 = vrot.slane %v2141, 6
          %v2148 = vsel %vm361, %v2146, %v2147
          %v2149 = vrot.slane %v2142, 6
          %v2150 = vsel %vm361, %v2147, %v2149
          %2151 = vrot.lane.b32.xlu0 %v2148, 122
          %v2152 = vpop.permute.xlu0 %2151
          %2153 = vrot.lane.b32.xlu0 %v2150, 122
          %v2154 = vpop.permute.xlu0 %2153
          %v2157 = vadd.f32 %v2136, %v2152
          %v2158 = vadd.f32 %v2137, %v2154
          %v2159 = vxor.u32 %v2157, 2147483648
          %v2160 = vxor.u32 %v2158, 2147483648
          %v2161 = vmul.f32 %v2159, 1.442695
          %v2162 = vpow.pop %v2161
          %v2163 = vmul.f32 %v2160, 1.442695
          %v2164 = vpow.pop %v2163
          %v2165 = vadd.f32 %v2162, 1.0
          %v2166 = vadd.f32 %v2164, 1.0
          %v2167 = vrcp.pop %v2165
          %v2168 = vmul.f32 1.0, %v2167
          %v2169 = vrcp.pop %v2166
          %v2170 = vmul.f32 1.0, %v2169
          %vm2171 = vcmask 130048
          %2172 = vst.msk [vmem:[%s192] sm:$0xff] %vm2171, %v2168
          %2173 = vst.msk [vmem:[%s192 + $0x8] sm:$0xff] %vm2171, %v2170
        $region51: #{spatial_attention_forward.1} parent=27 // pred_fallthru
          _
        %s2174 = sand.u32 %s89, 1
        %s2175 = scalar_lea.sflag [#allocation6], %s2174
        %s2176 = sand.u32 %s89, 1
        %s2177 = smul.addr %s2176, 16
        %s2178 = scalar_lea.vmem [#allocation9], %s2177
        // Predicated region
        $region52: #{spatial_attention_forward.1} parent=27 // pred_check
          %p2179 = pneg %p99
        $region53: #{spatial_attention_forward.1} parent=27 // pred_check_branch
          %2181 = sbr.rel (%p2179) target = $region55
        $region54: #{spatial_attention_forward.1} parent=27 // pred_region
          %s2183 = ssub.s32 256, 256
          %2184 = vsyncadd %s2175, %s2183
          %s2185 = smul.addr %s24, 2
          %s2186 = smul.addr %s2185, 128
          %s2187 = scalar_lea.hbm %s2, %s2186
          %s2188 = sshll.u32 %s2178, 4
          %s2189 = int_to_ptr.vmem [resolvable:$true] %s2188
          %2194 = dma.vmem_to_hbm [thread:$0]  %s2189, 256, %s2187, %s2175, 128, 128, 8
        $region55: #{spatial_attention_forward.1} parent=27 // pred_fallthru
          _
      $region28: #{spatial_attention_forward.1} parent=5 // pred_fallthru
        _
      %p2195 = scmp.le.s32.totalorder 2, %s15
      // Predicated region
      $region56: #{spatial_attention_forward.1} parent=5 // pred_check
        %p2196 = pneg %p2195
      $region57: #{spatial_attention_forward.1} parent=5 // pred_check_branch
        %2198 = sbr.rel (%p2196) target = $region59
      $region58: #{spatial_attention_forward.1} parent=5 // pred_region
        %s2199 = ssub.s32 %s15, 2
        // Predicated region
        $region60: #{spatial_attention_forward.1} parent=58 // pred_check
          %p2200 = pneg %p105
        $region61: #{spatial_attention_forward.1} parent=58 // pred_check_branch
          %2202 = sbr.rel (%p2200) target = $region63
        $region62: #{spatial_attention_forward.1} parent=58 // pred_region
          %s2203 = sand.u32 %s90, 1
          %s2204 = scalar_lea.sflag [#allocation6], %s2203
          %s2205 = sand.u32 %s90, 1
          %s2206 = smul.addr %s2205, 16
          %s2207 = scalar_lea.vmem [#allocation9], %s2206
          %2208 = dma.done %s2204, 256
        $region63: #{spatial_attention_forward.1} parent=58 // pred_fallthru
          _
      $region59: #{spatial_attention_forward.1} parent=5 // pred_fallthru
        _
    $region6: #{spatial_attention_forward.1} parent=1 // loop_footer
      %s19 = sadd.s32 1, %s15
    $region7: #{spatial_attention_forward.1} parent=1 // loop_footer_branch
      %14 = sbr.rel target = $region3
    $region8: #{spatial_attention_forward.1} parent=1 // loop_exit
      _
    %2209 = vsyncpa [#allocation5], 1
    %s2210 = scalar_lea.sflag [#allocation5], 1
    %2211 = vsyncpa %s2210, 1
    %2212 = vsyncpa [#allocation6], 1
    %s2213 = scalar_lea.sflag [#allocation6], 1
    %2214 = vsyncpa %s2213, 1
    %2215 = vsyncpa [#allocation7], 1
    %s2216 = scalar_lea.sflag [#allocation7], 1
    %2217 = vsyncpa %s2216, 1

</llo_original>
